<compile_context>
chip_gen: v7x
topology: tpu7x:2x2x1
jax: 0.10.0
libtpu: 0.0.40
codegen_flags: <defaults>
</compile_context>

<pallas_src>
import jax
import jax.numpy as jnp
from jax import lax
from jax.experimental import pallas as pl
from jax.experimental.pallas import tpu as pltpu

_TWO_PI = 6.283185307179586
_TARGET_TILE_ELEMS = 512 * 1024          # ~2 MiB per tile at f32 (1 MiB at bf16)
_LANE_WIDTHS = (2048, 1024, 512, 256, 128)


def _cdiv(a, b):
    return -(-a // b)


def _lowbias32(x):
    """High-avalanche 32-bit integer hash (uint32 in/out); VPU-only ops."""
    x = x ^ (x >> 16)
    x = x * jnp.uint32(0x7FEB352D)
    x = x ^ (x >> 15)
    x = x * jnp.uint32(0x846CA68B)
    x = x ^ (x >> 16)
    return x


def _bits_to_unit_float(bits):
    """uint32 random bits -> f32 uniform in [0, 1) via the exponent/mantissa trick."""
    mant = (bits >> 9) | jnp.uint32(0x3F800000)           # in [1, 2)
    return lax.bitcast_convert_type(mant, jnp.float32) - 1.0


def _gaussian_add_kernel(seed_ref, x_ref, o_ref):
    """o = x + N(0, 1); noise is a pure function of (seed, global element index)."""
    r, c = x_ref.shape
    tile_elems = r * c
    tile_id = pl.program_id(0)

    # Global linear element index for this tile (int32; wraps past 2^31 elements,
    # which only aliases counters for absurdly large tensors - fine for noise).
    row = lax.broadcasted_iota(jnp.int32, (r, c), 0)
    col = lax.broadcasted_iota(jnp.int32, (r, c), 1)
    idx = tile_id * tile_elems + row * c + col

    # Counter-based RNG: two counters per element (2*idx, 2*idx+1), mixed with the seed.
    seed_mix = seed_ref[0] * jnp.int32(-1640531527)       # 0x9E3779B9 (golden ratio, odd)
    ctr = lax.bitcast_convert_type((idx * 2) ^ seed_mix, jnp.uint32)
    b1 = _lowbias32(ctr)
    b2 = _lowbias32(ctr ^ jnp.uint32(1))

    u1 = 1.0 - _bits_to_unit_float(b1)                    # (0, 1]  (safe for log)
    u2 = _bits_to_unit_float(b2)                          # [0, 1)

    # Box-Muller -> standard normal (log/sqrt/cos sit on the EUP slot).
    radius = jnp.sqrt(-2.0 * jnp.log(u1))
    noise = radius * jnp.cos(_TWO_PI * u2)

    # Add in the input dtype (bf16 stays bf16 on v6e/v7x; f32 path unchanged).
    o_ref[...] = x_ref[...] + noise.astype(o_ref.dtype)


def gaussian_layer(x, *, training=True, seed=0):
    """JAX/Pallas equivalent of GaussianLayer.forward."""
    if not training:
        return x                                          # eval mode: exact identity

    n = x.size
    if n == 0:
        return x
    orig_shape = x.shape

    # ---- choose a lane-dense slab (rows, W): widest W (<=2048) that divides n ----
    lane_w = 128
    for w in _LANE_WIDTHS:
        if n % w == 0:
            lane_w = w
            break
    rows = _cdiv(n, lane_w)
    pad_elems = rows * lane_w - n                         # nonzero only if n % 128 != 0

    # ---- tile height: multiple of 8, ~<=2 MiB, tiles the slab with (near-)zero pad ----
    rows_per_tile = max(8, (_TARGET_TILE_ELEMS // lane_w) // 8 * 8)
    if rows <= rows_per_tile:
        rows_per_tile = rows                              # single full-extent block
        grid_rows = 1
    else:
        grid_rows = _cdiv(rows, rows_per_tile)
        # Balance tile heights so row padding is at most a few rows (usually zero).
        rows_per_tile = _cdiv(_cdiv(rows, grid_rows), 8) * 8
        padded_rows = grid_rows * rows_per_tile
        pad_elems += (padded_rows - rows) * lane_w
        rows = padded_rows

    flat = x.reshape(-1)
    if pad_elems:
        flat = jnp.pad(flat, (0, pad_elems))
    mat = flat.reshape(rows, lane_w)

    seed_arr = jnp.asarray([seed], dtype=jnp.int32)

    out = pl.pallas_call(
        _gaussian_add_kernel,
        out_shape=jax.ShapeDtypeStruct(mat.shape, mat.dtype),
        grid_spec=pltpu.PrefetchScalarGridSpec(
            num_scalar_prefetch=1,
            grid=(grid_rows,),
            in_specs=[pl.BlockSpec((rows_per_tile, lane_w), lambda i, _seed: (i, 0))],
            out_specs=pl.BlockSpec((rows_per_tile, lane_w), lambda i, _seed: (i, 0)),
        ),
        compiler_params=pltpu.CompilerParams(
            # Stateless per-element RNG -> grid steps are order-independent.
            dimension_semantics=("parallel",),
        ),
        # NOTE: input_output_aliases={1: 0} (alias x's slab to the output) is an optional,
        # modest further saving; omitted here to keep the call maximally portable.
    )(seed_arr, mat)

    if pad_elems:
        out = out.reshape(-1)[:n]
    return out.reshape(orig_shape)


if __name__ == "__main__":
    key = jax.random.PRNGKey(0)

    # Small NCHW input consistent with a conv-style module: (N, C, H, W)
    x = jax.random.normal(key, (2, 4, 16, 16), dtype=jnp.float32)

    # Training path: x + N(0, 1) noise (single-tile grid).
    y_train = jax.block_until_ready(gaussian_layer(x, training=True, seed=42))
    assert y_train.shape == x.shape and y_train.dtype == x.dtype
    assert bool(jnp.all(jnp.isfinite(y_train)))
    assert not bool(jnp.allclose(y_train, x))
    noise = y_train - x
    assert abs(float(noise.mean())) < 0.2
    assert abs(float(noise.std()) - 1.0) < 0.2

    # Eval path: exact identity, matching `return x`.
    y_eval = jax.block_until_ready(gaussian_layer(x, training=False))
    assert bool(jnp.array_equal(y_eval, x))

    # Larger input that exercises the multi-tile (grid > 1) path.
    x2 = jax.random.normal(jax.random.PRNGKey(1), (4, 16, 64, 64), dtype=jnp.float32)
    y2 = jax.block_until_ready(gaussian_layer(x2, training=True, seed=7))
    assert y2.shape == x2.shape and y2.dtype == x2.dtype
    noise2 = y2 - x2
    assert abs(float(noise2.mean())) < 0.1
    assert abs(float(noise2.std()) - 1.0) < 0.1

    print("KERNEL_OK")
</pallas_src>

<mosaic_0001>
module attributes {stable_mosaic.version = 11 : i64} {
  func.func @_gaussian_add_kernel(%arg0: i32, %arg1: memref<1xi32, #tpu.memory_space<smem>>, %arg2: memref<1x2048xf32, #tpu.memory_space<vmem>>, %arg3: memref<1x2048xf32, #tpu.memory_space<vmem>>) attributes {dimension_semantics = [#tpu.dimension_semantics<parallel>], iteration_bounds = array<i64: 1>, scalar_prefetch = 1 : i64, scratch_operands = 0 : i64, tpu.core_type = #tpu.core_type<tc>, window_params = [{transform_indices = @transform_0, window_bounds = array<i64: 1, 2048>}, {transform_indices = @transform_1, window_bounds = array<i64: 1, 2048>}]} {
    %0 = tpu.iota {dimensions = array<i32: 0>} : vector<1x2048xi32>
    %1 = tpu.iota {dimensions = array<i32: 1>} : vector<1x2048xi32>
    %c2048_i32 = arith.constant 2048 : i32
    %2 = arith.muli %arg0, %c2048_i32 : i32
    %c2048_i32_0 = arith.constant 2048 : i32
    %3 = vector.broadcast %c2048_i32_0 : i32 to vector<1x2048xi32>
    %4 = arith.muli %0, %3 : vector<1x2048xi32>
    %5 = vector.broadcast %2 : i32 to vector<1x2048xi32>
    %6 = arith.addi %5, %4 : vector<1x2048xi32>
    %7 = arith.addi %6, %1 : vector<1x2048xi32>
    %c0 = arith.constant 0 : index
    %8 = memref.load %arg1[%c0] : memref<1xi32, #tpu.memory_space<smem>>
    %c-1640531527_i32 = arith.constant -1640531527 : i32
    %9 = arith.muli %8, %c-1640531527_i32 : i32
    %c2_i32 = arith.constant 2 : i32
    %10 = vector.broadcast %c2_i32 : i32 to vector<1x2048xi32>
    %11 = arith.muli %7, %10 : vector<1x2048xi32>
    %12 = vector.broadcast %9 : i32 to vector<1x2048xi32>
    %13 = arith.xori %11, %12 : vector<1x2048xi32>
    %14 = tpu.bitcast %13 : vector<1x2048xi32> -> vector<1x2048xi32>
    %c16_i32 = arith.constant 16 : i32
    %15 = vector.broadcast %c16_i32 : i32 to vector<1x2048xi32>
    %16 = arith.shrui %14, %15 : vector<1x2048xi32>
    %17 = arith.xori %14, %16 : vector<1x2048xi32>
    %c2146121005_i32 = arith.constant 2146121005 : i32
    %18 = vector.broadcast %c2146121005_i32 : i32 to vector<1x2048xi32>
    %19 = arith.muli %17, %18 : vector<1x2048xi32>
    %c15_i32 = arith.constant 15 : i32
    %20 = vector.broadcast %c15_i32 : i32 to vector<1x2048xi32>
    %21 = arith.shrui %19, %20 : vector<1x2048xi32>
    %22 = arith.xori %19, %21 : vector<1x2048xi32>
    %c-2073254261_i32 = arith.constant -2073254261 : i32
    %23 = vector.broadcast %c-2073254261_i32 : i32 to vector<1x2048xi32>
    %24 = arith.muli %22, %23 : vector<1x2048xi32>
    %c16_i32_1 = arith.constant 16 : i32
    %25 = vector.broadcast %c16_i32_1 : i32 to vector<1x2048xi32>
    %26 = arith.shrui %24, %25 : vector<1x2048xi32>
    %27 = arith.xori %24, %26 : vector<1x2048xi32>
    %c1_i32 = arith.constant 1 : i32
    %28 = vector.broadcast %c1_i32 : i32 to vector<1x2048xi32>
    %29 = arith.xori %14, %28 : vector<1x2048xi32>
    %c16_i32_2 = arith.constant 16 : i32
    %30 = vector.broadcast %c16_i32_2 : i32 to vector<1x2048xi32>
    %31 = arith.shrui %29, %30 : vector<1x2048xi32>
    %32 = arith.xori %29, %31 : vector<1x2048xi32>
    %c2146121005_i32_3 = arith.constant 2146121005 : i32
    %33 = vector.broadcast %c2146121005_i32_3 : i32 to vector<1x2048xi32>
    %34 = arith.muli %32, %33 : vector<1x2048xi32>
    %c15_i32_4 = arith.constant 15 : i32
    %35 = vector.broadcast %c15_i32_4 : i32 to vector<1x2048xi32>
    %36 = arith.shrui %34, %35 : vector<1x2048xi32>
    %37 = arith.xori %34, %36 : vector<1x2048xi32>
    %c-2073254261_i32_5 = arith.constant -2073254261 : i32
    %38 = vector.broadcast %c-2073254261_i32_5 : i32 to vector<1x2048xi32>
    %39 = arith.muli %37, %38 : vector<1x2048xi32>
    %c16_i32_6 = arith.constant 16 : i32
    %40 = vector.broadcast %c16_i32_6 : i32 to vector<1x2048xi32>
    %41 = arith.shrui %39, %40 : vector<1x2048xi32>
    %42 = arith.xori %39, %41 : vector<1x2048xi32>
    %c9_i32 = arith.constant 9 : i32
    %43 = vector.broadcast %c9_i32 : i32 to vector<1x2048xi32>
    %44 = arith.shrui %27, %43 : vector<1x2048xi32>
    %c1065353216_i32 = arith.constant 1065353216 : i32
    %45 = vector.broadcast %c1065353216_i32 : i32 to vector<1x2048xi32>
    %46 = arith.ori %44, %45 : vector<1x2048xi32>
    %47 = tpu.bitcast %46 : vector<1x2048xi32> -> vector<1x2048xf32>
    %cst = arith.constant 1.000000e+00 : f32
    %48 = vector.broadcast %cst : f32 to vector<1x2048xf32>
    %49 = arith.subf %47, %48 : vector<1x2048xf32>
    %cst_7 = arith.constant 1.000000e+00 : f32
    %50 = vector.broadcast %cst_7 : f32 to vector<1x2048xf32>
    %51 = arith.subf %50, %49 : vector<1x2048xf32>
    %c9_i32_8 = arith.constant 9 : i32
    %52 = vector.broadcast %c9_i32_8 : i32 to vector<1x2048xi32>
    %53 = arith.shrui %42, %52 : vector<1x2048xi32>
    %c1065353216_i32_9 = arith.constant 1065353216 : i32
    %54 = vector.broadcast %c1065353216_i32_9 : i32 to vector<1x2048xi32>
    %55 = arith.ori %53, %54 : vector<1x2048xi32>
    %56 = tpu.bitcast %55 : vector<1x2048xi32> -> vector<1x2048xf32>
    %cst_10 = arith.constant 1.000000e+00 : f32
    %57 = vector.broadcast %cst_10 : f32 to vector<1x2048xf32>
    %58 = arith.subf %56, %57 : vector<1x2048xf32>
    %59 = math.log %51 : vector<1x2048xf32>
    %cst_11 = arith.constant -2.000000e+00 : f32
    %60 = vector.broadcast %cst_11 : f32 to vector<1x2048xf32>
    %61 = arith.mulf %60, %59 : vector<1x2048xf32>
    %62 = math.sqrt %61 : vector<1x2048xf32>
    %cst_12 = arith.constant 6.28318548 : f32
    %63 = vector.broadcast %cst_12 : f32 to vector<1x2048xf32>
    %64 = arith.mulf %63, %58 : vector<1x2048xf32>
    %65 = math.cos %64 : vector<1x2048xf32>
    %66 = arith.mulf %62, %65 : vector<1x2048xf32>
    %c0_13 = arith.constant 0 : index
    %c0_14 = arith.constant 0 : index
    %67 = vector.load %arg2[%c0_13, %c0_14] : memref<1x2048xf32, #tpu.memory_space<vmem>>, vector<1x2048xf32>
    %68 = arith.addf %67, %66 : vector<1x2048xf32>
    %c0_15 = arith.constant 0 : index
    %c0_16 = arith.constant 0 : index
    %69 = vector.load %arg3[%c0_15, %c0_16] : memref<1x2048xf32, #tpu.memory_space<vmem>>, vector<1x2048xf32>
    tpu.vector_store %arg3[%c0_15, %c0_16], %68 {strides = array<i32>} : memref<1x2048xf32, #tpu.memory_space<vmem>>, vector<1x2048xf32>,
    return
  }
  func.func @transform_0(%arg0: i32, %arg1: memref<1xi32, #tpu.memory_space<smem>>) -> (i32, i32) {
    %c0_i32 = arith.constant 0 : i32
    %c0_i32_0 = arith.constant 0 : i32
    return %arg0, %c0_i32 : i32, i32
  }
  func.func @transform_1(%arg0: i32, %arg1: memref<1xi32, #tpu.memory_space<smem>>) -> (i32, i32) {
    %c0_i32 = arith.constant 0 : i32
    %c0_i32_0 = arith.constant 0 : i32
    return %arg0, %c0_i32 : i32, i32
  }
}

</mosaic_0001>

<llo_original>
// kernel: tpu_custom_call.1
$region0: #{tpu_custom_call.1}
  #allocation0 [shape = 'u32[]', space=smem, size = 0x4, offset = 0x4, fixed_abs, tag = 'smem constant byte address 0x4 - core index']
  #allocation1 [shape = 'u32[144,128]{1,0:T(1,128)}', space=vmem, size = 0x12000, scoped, tag = 'internal scratch']
  #allocation2 [shape = 's32[1]{0}', space=sflag, size = 0x4, scoped, tag = 'scoped memory for tpu_custom_call.1']
  #allocation3 [shape = 's32[1]{0:T(128)S(6)}', space=smem, size = 0x200, scoped, tag = 'prefetched SMEM operand 0']
  %s0 = inlined_call_operand.<no memory space> [shape: s32[1], index: 0, kind: input, shape index: {}]
  %s1 = inlined_call_operand.hbm [shape: f32[1,2048], index: 1, kind: input, shape index: {}]
  %s2 = inlined_call_operand.hbm [shape: f32[1,2048], index: 2, kind: output, shape index: {}]
  %s3 = sld [smem:[#allocation0]]
  $region18: #{tpu_custom_call.1} parent=0
    _
  %s5 = ssub.s32 1, %s3
  %s6 = scalar_select 0, %s5, %s3
  %7 = sst [smem:[#allocation3]] %s0
  $region1: #{tpu_custom_call.1} parent=0
    #allocation4 [shape = 'u8[8192]{0}', space=vmem, size = 0x2000, scoped, tag = 'input window, operand 1, single buffered']
    #allocation5 [shape = 's32[1]{0}', space=sflag, size = 0x4, scoped, tag = 'scoped memory for tpu_custom_call.1']
    #allocation6 [shape = 's32[1]{0}', space=sflag, size = 0x4, scoped, tag = 'scoped memory for tpu_custom_call.1']
    #allocation7 [shape = 'u8[8192]{0}', space=vmem, size = 0x2000, scoped, tag = 'output window, operand 0, single buffered']
    %8 = vsyncpa [#allocation5], 0
    %9 = vsyncpa [#allocation6], 0
    // Predicated region
    $region2: #{tpu_custom_call.1} parent=1 // pred_check
      _
    $region3: #{tpu_custom_call.1} parent=1 // pred_check_branch
      %11 = sbr.rel (0) target = $region5
    $region4: #{tpu_custom_call.1} parent=1 // pred_region
      %s13 = ssub.s32 256, 256
      %14 = vsyncadd [#allocation5], %s13
      %s16 = sshll.u32 [#allocation4], 4
      %s17 = int_to_ptr.vmem [resolvable:$true] %s16
      %19 = dma.hbm_to_vmem [thread:$0]  %s1, 256, %s17, [#allocation5]
    $region5: #{tpu_custom_call.1} parent=1 // pred_fallthru
      _
    // Predicated region
    $region6: #{tpu_custom_call.1} parent=1 // pred_check
      _
    $region7: #{tpu_custom_call.1} parent=1 // pred_check_branch
      %21 = sbr.rel (0) target = $region9
    $region8: #{tpu_custom_call.1} parent=1 // pred_region
      %22 = dma.done [#allocation5], 256
    $region9: #{tpu_custom_call.1} parent=1 // pred_fallthru
      _
    %v23 = vlaneseq
    %v24 = vshrl.u32 %v23, 7
    %v25 = vlaneseq
    %v26 = vand.u32 %v25, 127
    %v27 = vadd.s32 %v26, 128
    %v28 = vadd.s32 %v26, 256
    %v29 = vadd.s32 %v26, 384
    %v30 = vadd.s32 %v26, 512
    %v31 = vadd.s32 %v26, 640
    %v32 = vadd.s32 %v26, 768
    %v33 = vadd.s32 %v26, 896
    %v34 = vadd.s32 %v26, 1024
    %v35 = vadd.s32 %v26, 1152
    %v36 = vadd.s32 %v26, 1280
    %v37 = vadd.s32 %v26, 1408
    %v38 = vadd.s32 %v26, 1536
    %v39 = vadd.s32 %v26, 1664
    %v40 = vadd.s32 %v26, 1792
    %v41 = vadd.s32 %v26, 1920
    %s42 = smul.u32 0, 2048
    %v43 = vmul.u32 %v24, 2048
    %v44 = vstv %s42
    %v45 = vadd.s32 %v44, %v43
    %v46 = vadd.s32 %v45, %v26
    %v47 = vadd.s32 %v45, %v27
    %v48 = vadd.s32 %v45, %v28
    %v49 = vadd.s32 %v45, %v29
    %v50 = vadd.s32 %v45, %v30
    %v51 = vadd.s32 %v45, %v31
    %v52 = vadd.s32 %v45, %v32
    %v53 = vadd.s32 %v45, %v33
    %v54 = vadd.s32 %v45, %v34
    %v55 = vadd.s32 %v45, %v35
    %v56 = vadd.s32 %v45, %v36
    %v57 = vadd.s32 %v45, %v37
    %v58 = vadd.s32 %v45, %v38
    %v59 = vadd.s32 %v45, %v39
    %v60 = vadd.s32 %v45, %v40
    %v61 = vadd.s32 %v45, %v41
    %s62 = sld [smem:[#allocation3]]
    %s63 = smul.u32 %s62, 2654435769
    %v64 = vmul.u32 %v46, 2
    %v65 = vmul.u32 %v47, 2
    %v66 = vmul.u32 %v48, 2
    %v67 = vmul.u32 %v49, 2
    %v68 = vmul.u32 %v50, 2
    %v69 = vmul.u32 %v51, 2
    %v70 = vmul.u32 %v52, 2
    %v71 = vmul.u32 %v53, 2
    %v72 = vmul.u32 %v54, 2
    %v73 = vmul.u32 %v55, 2
    %v74 = vmul.u32 %v56, 2
    %v75 = vmul.u32 %v57, 2
    %v76 = vmul.u32 %v58, 2
    %v77 = vmul.u32 %v59, 2
    %v78 = vmul.u32 %v60, 2
    %v79 = vmul.u32 %v61, 2
    %v80 = vstv %s63
    %v81 = vxor.u32 %v64, %v80
    %v82 = vxor.u32 %v65, %v80
    %v83 = vxor.u32 %v66, %v80
    %v84 = vxor.u32 %v67, %v80
    %v85 = vxor.u32 %v68, %v80
    %v86 = vxor.u32 %v69, %v80
    %v87 = vxor.u32 %v70, %v80
    %v88 = vxor.u32 %v71, %v80
    %v89 = vxor.u32 %v72, %v80
    %v90 = vxor.u32 %v73, %v80
    %v91 = vxor.u32 %v74, %v80
    %v92 = vxor.u32 %v75, %v80
    %v93 = vxor.u32 %v76, %v80
    %v94 = vxor.u32 %v77, %v80
    %v95 = vxor.u32 %v78, %v80
    %v96 = vxor.u32 %v79, %v80
    %v97 = vshrl.u32 %v81, 16
    %v98 = vshrl.u32 %v82, 16
    %v99 = vshrl.u32 %v83, 16
    %v100 = vshrl.u32 %v84, 16
    %v101 = vshrl.u32 %v85, 16
    %v102 = vshrl.u32 %v86, 16
    %v103 = vshrl.u32 %v87, 16
    %v104 = vshrl.u32 %v88, 16
    %v105 = vshrl.u32 %v89, 16
    %v106 = vshrl.u32 %v90, 16
    %v107 = vshrl.u32 %v91, 16
    %v108 = vshrl.u32 %v92, 16
    %v109 = vshrl.u32 %v93, 16
    %v110 = vshrl.u32 %v94, 16
    %v111 = vshrl.u32 %v95, 16
    %v112 = vshrl.u32 %v96, 16
    %v113 = vxor.u32 %v81, %v97
    %v114 = vxor.u32 %v82, %v98
    %v115 = vxor.u32 %v83, %v99
    %v116 = vxor.u32 %v84, %v100
    %v117 = vxor.u32 %v85, %v101
    %v118 = vxor.u32 %v86, %v102
    %v119 = vxor.u32 %v87, %v103
    %v120 = vxor.u32 %v88, %v104
    %v121 = vxor.u32 %v89, %v105
    %v122 = vxor.u32 %v90, %v106
    %v123 = vxor.u32 %v91, %v107
    %v124 = vxor.u32 %v92, %v108
    %v125 = vxor.u32 %v93, %v109
    %v126 = vxor.u32 %v94, %v110
    %v127 = vxor.u32 %v95, %v111
    %v128 = vxor.u32 %v96, %v112
    %v129 = vmul.u32 %v113, 2146121005
    %v130 = vmul.u32 %v114, 2146121005
    %v131 = vmul.u32 %v115, 2146121005
    %v132 = vmul.u32 %v116, 2146121005
    %v133 = vmul.u32 %v117, 2146121005
    %v134 = vmul.u32 %v118, 2146121005
    %v135 = vmul.u32 %v119, 2146121005
    %v136 = vmul.u32 %v120, 2146121005
    %v137 = vmul.u32 %v121, 2146121005
    %v138 = vmul.u32 %v122, 2146121005
    %v139 = vmul.u32 %v123, 2146121005
    %v140 = vmul.u32 %v124, 2146121005
    %v141 = vmul.u32 %v125, 2146121005
    %v142 = vmul.u32 %v126, 2146121005
    %v143 = vmul.u32 %v127, 2146121005
    %v144 = vmul.u32 %v128, 2146121005
    %v145 = vshrl.u32 %v129, 15
    %v146 = vshrl.u32 %v130, 15
    %v147 = vshrl.u32 %v131, 15
    %v148 = vshrl.u32 %v132, 15
    %v149 = vshrl.u32 %v133, 15
    %v150 = vshrl.u32 %v134, 15
    %v151 = vshrl.u32 %v135, 15
    %v152 = vshrl.u32 %v136, 15
    %v153 = vshrl.u32 %v137, 15
    %v154 = vshrl.u32 %v138, 15
    %v155 = vshrl.u32 %v139, 15
    %v156 = vshrl.u32 %v140, 15
    %v157 = vshrl.u32 %v141, 15
    %v158 = vshrl.u32 %v142, 15
    %v159 = vshrl.u32 %v143, 15
    %v160 = vshrl.u32 %v144, 15
    %v161 = vxor.u32 %v129, %v145
    %v162 = vxor.u32 %v130, %v146
    %v163 = vxor.u32 %v131, %v147
    %v164 = vxor.u32 %v132, %v148
    %v165 = vxor.u32 %v133, %v149
    %v166 = vxor.u32 %v134, %v150
    %v167 = vxor.u32 %v135, %v151
    %v168 = vxor.u32 %v136, %v152
    %v169 = vxor.u32 %v137, %v153
    %v170 = vxor.u32 %v138, %v154
    %v171 = vxor.u32 %v139, %v155
    %v172 = vxor.u32 %v140, %v156
    %v173 = vxor.u32 %v141, %v157
    %v174 = vxor.u32 %v142, %v158
    %v175 = vxor.u32 %v143, %v159
    %v176 = vxor.u32 %v144, %v160
    %v177 = vmul.u32 %v161, 2221713035
    %v178 = vmul.u32 %v162, 2221713035
    %v179 = vmul.u32 %v163, 2221713035
    %v180 = vmul.u32 %v164, 2221713035
    %v181 = vmul.u32 %v165, 2221713035
    %v182 = vmul.u32 %v166, 2221713035
    %v183 = vmul.u32 %v167, 2221713035
    %v184 = vmul.u32 %v168, 2221713035
    %v185 = vmul.u32 %v169, 2221713035
    %v186 = vmul.u32 %v170, 2221713035
    %v187 = vmul.u32 %v171, 2221713035
    %v188 = vmul.u32 %v172, 2221713035
    %v189 = vmul.u32 %v173, 2221713035
    %v190 = vmul.u32 %v174, 2221713035
    %v191 = vmul.u32 %v175, 2221713035
    %v192 = vmul.u32 %v176, 2221713035
    %v193 = vshrl.u32 %v177, 16
    %v194 = vshrl.u32 %v178, 16
    %v195 = vshrl.u32 %v179, 16
    %v196 = vshrl.u32 %v180, 16
    %v197 = vshrl.u32 %v181, 16
    %v198 = vshrl.u32 %v182, 16
    %v199 = vshrl.u32 %v183, 16
    %v200 = vshrl.u32 %v184, 16
    %v201 = vshrl.u32 %v185, 16
    %v202 = vshrl.u32 %v186, 16
    %v203 = vshrl.u32 %v187, 16
    %v204 = vshrl.u32 %v188, 16
    %v205 = vshrl.u32 %v189, 16
    %v206 = vshrl.u32 %v190, 16
    %v207 = vshrl.u32 %v191, 16
    %v208 = vshrl.u32 %v192, 16
    %v209 = vxor.u32 %v177, %v193
    %v210 = vxor.u32 %v178, %v194
    %v211 = vxor.u32 %v179, %v195
    %v212 = vxor.u32 %v180, %v196
    %v213 = vxor.u32 %v181, %v197
    %v214 = vxor.u32 %v182, %v198
    %v215 = vxor.u32 %v183, %v199
    %v216 = vxor.u32 %v184, %v200
    %v217 = vxor.u32 %v185, %v201
    %v218 = vxor.u32 %v186, %v202
    %v219 = vxor.u32 %v187, %v203
    %v220 = vxor.u32 %v188, %v204
    %v221 = vxor.u32 %v189, %v205
    %v222 = vxor.u32 %v190, %v206
    %v223 = vxor.u32 %v191, %v207
    %v224 = vxor.u32 %v192, %v208
    %v225 = vxor.u32 %v81, 1
    %v226 = vxor.u32 %v82, 1
    %v227 = vxor.u32 %v83, 1
    %v228 = vxor.u32 %v84, 1
    %v229 = vxor.u32 %v85, 1
    %v230 = vxor.u32 %v86, 1
    %v231 = vxor.u32 %v87, 1
    %v232 = vxor.u32 %v88, 1
    %v233 = vxor.u32 %v89, 1
    %v234 = vxor.u32 %v90, 1
    %v235 = vxor.u32 %v91, 1
    %v236 = vxor.u32 %v92, 1
    %v237 = vxor.u32 %v93, 1
    %v238 = vxor.u32 %v94, 1
    %v239 = vxor.u32 %v95, 1
    %v240 = vxor.u32 %v96, 1
    %v241 = vshrl.u32 %v225, 16
    %v242 = vshrl.u32 %v226, 16
    %v243 = vshrl.u32 %v227, 16
    %v244 = vshrl.u32 %v228, 16
    %v245 = vshrl.u32 %v229, 16
    %v246 = vshrl.u32 %v230, 16
    %v247 = vshrl.u32 %v231, 16
    %v248 = vshrl.u32 %v232, 16
    %v249 = vshrl.u32 %v233, 16
    %v250 = vshrl.u32 %v234, 16
    %v251 = vshrl.u32 %v235, 16
    %v252 = vshrl.u32 %v236, 16
    %v253 = vshrl.u32 %v237, 16
    %v254 = vshrl.u32 %v238, 16
    %v255 = vshrl.u32 %v239, 16
    %v256 = vshrl.u32 %v240, 16
    %v257 = vxor.u32 %v225, %v241
    %v258 = vxor.u32 %v226, %v242
    %v259 = vxor.u32 %v227, %v243
    %v260 = vxor.u32 %v228, %v244
    %v261 = vxor.u32 %v229, %v245
    %v262 = vxor.u32 %v230, %v246
    %v263 = vxor.u32 %v231, %v247
    %v264 = vxor.u32 %v232, %v248
    %v265 = vxor.u32 %v233, %v249
    %v266 = vxor.u32 %v234, %v250
    %v267 = vxor.u32 %v235, %v251
    %v268 = vxor.u32 %v236, %v252
    %v269 = vxor.u32 %v237, %v253
    %v270 = vxor.u32 %v238, %v254
    %v271 = vxor.u32 %v239, %v255
    %v272 = vxor.u32 %v240, %v256
    %v273 = vmul.u32 %v257, 2146121005
    %v274 = vmul.u32 %v258, 2146121005
    %v275 = vmul.u32 %v259, 2146121005
    %v276 = vmul.u32 %v260, 2146121005
    %v277 = vmul.u32 %v261, 2146121005
    %v278 = vmul.u32 %v262, 2146121005
    %v279 = vmul.u32 %v263, 2146121005
    %v280 = vmul.u32 %v264, 2146121005
    %v281 = vmul.u32 %v265, 2146121005
    %v282 = vmul.u32 %v266, 2146121005
    %v283 = vmul.u32 %v267, 2146121005
    %v284 = vmul.u32 %v268, 2146121005
    %v285 = vmul.u32 %v269, 2146121005
    %v286 = vmul.u32 %v270, 2146121005
    %v287 = vmul.u32 %v271, 2146121005
    %v288 = vmul.u32 %v272, 2146121005
    %v289 = vshrl.u32 %v273, 15
    %v290 = vshrl.u32 %v274, 15
    %v291 = vshrl.u32 %v275, 15
    %v292 = vshrl.u32 %v276, 15
    %v293 = vshrl.u32 %v277, 15
    %v294 = vshrl.u32 %v278, 15
    %v295 = vshrl.u32 %v279, 15
    %v296 = vshrl.u32 %v280, 15
    %v297 = vshrl.u32 %v281, 15
    %v298 = vshrl.u32 %v282, 15
    %v299 = vshrl.u32 %v283, 15
    %v300 = vshrl.u32 %v284, 15
    %v301 = vshrl.u32 %v285, 15
    %v302 = vshrl.u32 %v286, 15
    %v303 = vshrl.u32 %v287, 15
    %v304 = vshrl.u32 %v288, 15
    %v305 = vxor.u32 %v273, %v289
    %v306 = vxor.u32 %v274, %v290
    %v307 = vxor.u32 %v275, %v291
    %v308 = vxor.u32 %v276, %v292
    %v309 = vxor.u32 %v277, %v293
    %v310 = vxor.u32 %v278, %v294
    %v311 = vxor.u32 %v279, %v295
    %v312 = vxor.u32 %v280, %v296
    %v313 = vxor.u32 %v281, %v297
    %v314 = vxor.u32 %v282, %v298
    %v315 = vxor.u32 %v283, %v299
    %v316 = vxor.u32 %v284, %v300
    %v317 = vxor.u32 %v285, %v301
    %v318 = vxor.u32 %v286, %v302
    %v319 = vxor.u32 %v287, %v303
    %v320 = vxor.u32 %v288, %v304
    %v321 = vmul.u32 %v305, 2221713035
    %v322 = vmul.u32 %v306, 2221713035
    %v323 = vmul.u32 %v307, 2221713035
    %v324 = vmul.u32 %v308, 2221713035
    %v325 = vmul.u32 %v309, 2221713035
    %v326 = vmul.u32 %v310, 2221713035
    %v327 = vmul.u32 %v311, 2221713035
    %v328 = vmul.u32 %v312, 2221713035
    %v329 = vmul.u32 %v313, 2221713035
    %v330 = vmul.u32 %v314, 2221713035
    %v331 = vmul.u32 %v315, 2221713035
    %v332 = vmul.u32 %v316, 2221713035
    %v333 = vmul.u32 %v317, 2221713035
    %v334 = vmul.u32 %v318, 2221713035
    %v335 = vmul.u32 %v319, 2221713035
    %v336 = vmul.u32 %v320, 2221713035
    %v337 = vshrl.u32 %v321, 16
    %v338 = vshrl.u32 %v322, 16
    %v339 = vshrl.u32 %v323, 16
    %v340 = vshrl.u32 %v324, 16
    %v341 = vshrl.u32 %v325, 16
    %v342 = vshrl.u32 %v326, 16
    %v343 = vshrl.u32 %v327, 16
    %v344 = vshrl.u32 %v328, 16
    %v345 = vshrl.u32 %v329, 16
    %v346 = vshrl.u32 %v330, 16
    %v347 = vshrl.u32 %v331, 16
    %v348 = vshrl.u32 %v332, 16
    %v349 = vshrl.u32 %v333, 16
    %v350 = vshrl.u32 %v334, 16
    %v351 = vshrl.u32 %v335, 16
    %v352 = vshrl.u32 %v336, 16
    %v353 = vxor.u32 %v321, %v337
    %v354 = vxor.u32 %v322, %v338
    %v355 = vxor.u32 %v323, %v339
    %v356 = vxor.u32 %v324, %v340
    %v357 = vxor.u32 %v325, %v341
    %v358 = vxor.u32 %v326, %v342
    %v359 = vxor.u32 %v327, %v343
    %v360 = vxor.u32 %v328, %v344
    %v361 = vxor.u32 %v329, %v345
    %v362 = vxor.u32 %v330, %v346
    %v363 = vxor.u32 %v331, %v347
    %v364 = vxor.u32 %v332, %v348
    %v365 = vxor.u32 %v333, %v349
    %v366 = vxor.u32 %v334, %v350
    %v367 = vxor.u32 %v335, %v351
    %v368 = vxor.u32 %v336, %v352
    %v369 = vshrl.u32 %v209, 9
    %v370 = vshrl.u32 %v210, 9
    %v371 = vshrl.u32 %v211, 9
    %v372 = vshrl.u32 %v212, 9
    %v373 = vshrl.u32 %v213, 9
    %v374 = vshrl.u32 %v214, 9
    %v375 = vshrl.u32 %v215, 9
    %v376 = vshrl.u32 %v216, 9
    %v377 = vshrl.u32 %v217, 9
    %v378 = vshrl.u32 %v218, 9
    %v379 = vshrl.u32 %v219, 9
    %v380 = vshrl.u32 %v220, 9
    %v381 = vshrl.u32 %v221, 9
    %v382 = vshrl.u32 %v222, 9
    %v383 = vshrl.u32 %v223, 9
    %v384 = vshrl.u32 %v224, 9
    %v385 = vor.u32 %v369, 1065353216
    %v386 = vor.u32 %v370, 1065353216
    %v387 = vor.u32 %v371, 1065353216
    %v388 = vor.u32 %v372, 1065353216
    %v389 = vor.u32 %v373, 1065353216
    %v390 = vor.u32 %v374, 1065353216
    %v391 = vor.u32 %v375, 1065353216
    %v392 = vor.u32 %v376, 1065353216
    %v393 = vor.u32 %v377, 1065353216
    %v394 = vor.u32 %v378, 1065353216
    %v395 = vor.u32 %v379, 1065353216
    %v396 = vor.u32 %v380, 1065353216
    %v397 = vor.u32 %v381, 1065353216
    %v398 = vor.u32 %v382, 1065353216
    %v399 = vor.u32 %v383, 1065353216
    %v400 = vor.u32 %v384, 1065353216
    %v417 = vsub.f32 %v385, 1.0
    %v418 = vsub.f32 %v386, 1.0
    %v419 = vsub.f32 %v387, 1.0
    %v420 = vsub.f32 %v388, 1.0
    %v421 = vsub.f32 %v389, 1.0
    %v422 = vsub.f32 %v390, 1.0
    %v423 = vsub.f32 %v391, 1.0
    %v424 = vsub.f32 %v392, 1.0
    %v425 = vsub.f32 %v393, 1.0
    %v426 = vsub.f32 %v394, 1.0
    %v427 = vsub.f32 %v395, 1.0
    %v428 = vsub.f32 %v396, 1.0
    %v429 = vsub.f32 %v397, 1.0
    %v430 = vsub.f32 %v398, 1.0
    %v431 = vsub.f32 %v399, 1.0
    %v432 = vsub.f32 %v400, 1.0
    %v433 = vsub.f32 1.0, %v417
    %v434 = vsub.f32 1.0, %v418
    %v435 = vsub.f32 1.0, %v419
    %v436 = vsub.f32 1.0, %v420
    %v437 = vsub.f32 1.0, %v421
    %v438 = vsub.f32 1.0, %v422
    %v439 = vsub.f32 1.0, %v423
    %v440 = vsub.f32 1.0, %v424
    %v441 = vsub.f32 1.0, %v425
    %v442 = vsub.f32 1.0, %v426
    %v443 = vsub.f32 1.0, %v427
    %v444 = vsub.f32 1.0, %v428
    %v445 = vsub.f32 1.0, %v429
    %v446 = vsub.f32 1.0, %v430
    %v447 = vsub.f32 1.0, %v431
    %v448 = vsub.f32 1.0, %v432
    %v449 = vshrl.u32 %v353, 9
    %v450 = vshrl.u32 %v354, 9
    %v451 = vshrl.u32 %v355, 9
    %v452 = vshrl.u32 %v356, 9
    %v453 = vshrl.u32 %v357, 9
    %v454 = vshrl.u32 %v358, 9
    %v455 = vshrl.u32 %v359, 9
    %v456 = vshrl.u32 %v360, 9
    %v457 = vshrl.u32 %v361, 9
    %v458 = vshrl.u32 %v362, 9
    %v459 = vshrl.u32 %v363, 9
    %v460 = vshrl.u32 %v364, 9
    %v461 = vshrl.u32 %v365, 9
    %v462 = vshrl.u32 %v366, 9
    %v463 = vshrl.u32 %v367, 9
    %v464 = vshrl.u32 %v368, 9
    %v465 = vor.u32 %v449, 1065353216
    %v466 = vor.u32 %v450, 1065353216
    %v467 = vor.u32 %v451, 1065353216
    %v468 = vor.u32 %v452, 1065353216
    %v469 = vor.u32 %v453, 1065353216
    %v470 = vor.u32 %v454, 1065353216
    %v471 = vor.u32 %v455, 1065353216
    %v472 = vor.u32 %v456, 1065353216
    %v473 = vor.u32 %v457, 1065353216
    %v474 = vor.u32 %v458, 1065353216
    %v475 = vor.u32 %v459, 1065353216
    %v476 = vor.u32 %v460, 1065353216
    %v477 = vor.u32 %v461, 1065353216
    %v478 = vor.u32 %v462, 1065353216
    %v479 = vor.u32 %v463, 1065353216
    %v480 = vor.u32 %v464, 1065353216
    %v497 = vsub.f32 %v465, 1.0
    %v498 = vsub.f32 %v466, 1.0
    %v499 = vsub.f32 %v467, 1.0
    %v500 = vsub.f32 %v468, 1.0
    %v501 = vsub.f32 %v469, 1.0
    %v502 = vsub.f32 %v470, 1.0
    %v503 = vsub.f32 %v471, 1.0
    %v504 = vsub.f32 %v472, 1.0
    %v505 = vsub.f32 %v473, 1.0
    %v506 = vsub.f32 %v474, 1.0
    %v507 = vsub.f32 %v475, 1.0
    %v508 = vsub.f32 %v476, 1.0
    %v509 = vsub.f32 %v477, 1.0
    %v510 = vsub.f32 %v478, 1.0
    %v511 = vsub.f32 %v479, 1.0
    %v512 = vsub.f32 %v480, 1.0
    %v513 = vlog2.pop %v433
    %v514 = vmul.f32 %v513, 0.6931472
    %v515 = vlog2.pop %v434
    %v516 = vmul.f32 %v515, 0.6931472
    %v517 = vlog2.pop %v435
    %v518 = vmul.f32 %v517, 0.6931472
    %v519 = vlog2.pop %v436
    %v520 = vmul.f32 %v519, 0.6931472
    %v521 = vlog2.pop %v437
    %v522 = vmul.f32 %v521, 0.6931472
    %v523 = vlog2.pop %v438
    %v524 = vmul.f32 %v523, 0.6931472
    %v525 = vlog2.pop %v439
    %v526 = vmul.f32 %v525, 0.6931472
    %v527 = vlog2.pop %v440
    %v528 = vmul.f32 %v527, 0.6931472
    %v529 = vlog2.pop %v441
    %v530 = vmul.f32 %v529, 0.6931472
    %v531 = vlog2.pop %v442
    %v532 = vmul.f32 %v531, 0.6931472
    %v533 = vlog2.pop %v443
    %v534 = vmul.f32 %v533, 0.6931472
    %v535 = vlog2.pop %v444
    %v536 = vmul.f32 %v535, 0.6931472
    %v537 = vlog2.pop %v445
    %v538 = vmul.f32 %v537, 0.6931472
    %v539 = vlog2.pop %v446
    %v540 = vmul.f32 %v539, 0.6931472
    %v541 = vlog2.pop %v447
    %v542 = vmul.f32 %v541, 0.6931472
    %v543 = vlog2.pop %v448
    %v544 = vmul.f32 %v543, 0.6931472
    %v545 = vmul.f32 %v514, -2.0
    %v546 = vmul.f32 %v516, -2.0
    %v547 = vmul.f32 %v518, -2.0
    %v548 = vmul.f32 %v520, -2.0
    %v549 = vmul.f32 %v522, -2.0
    %v550 = vmul.f32 %v524, -2.0
    %v551 = vmul.f32 %v526, -2.0
    %v552 = vmul.f32 %v528, -2.0
    %v553 = vmul.f32 %v530, -2.0
    %v554 = vmul.f32 %v532, -2.0
    %v555 = vmul.f32 %v534, -2.0
    %v556 = vmul.f32 %v536, -2.0
    %v557 = vmul.f32 %v538, -2.0
    %v558 = vmul.f32 %v540, -2.0
    %v559 = vmul.f32 %v542, -2.0
    %v560 = vmul.f32 %v544, -2.0
    %v561 = vrsqrt.pop %v545
    %v562 = vmul.f32 %v545, %v561
    %vm563 = vcmp.eq.f32.partialorder %v545, inf
    %v564 = vsel %vm563, %v545, %v562
    %vm565 = vcmp.eq.f32.partialorder %v545, 0.0
    %v566 = vand.u32 %v545, 2147483648
    %v567 = vsel %vm565, %v566, %v564
    %v568 = vrsqrt.pop %v546
    %v569 = vmul.f32 %v546, %v568
    %vm570 = vcmp.eq.f32.partialorder %v546, inf
    %v571 = vsel %vm570, %v546, %v569
    %vm572 = vcmp.eq.f32.partialorder %v546, 0.0
    %v573 = vand.u32 %v546, 2147483648
    %v574 = vsel %vm572, %v573, %v571
    %v575 = vrsqrt.pop %v547
    %v576 = vmul.f32 %v547, %v575
    %vm577 = vcmp.eq.f32.partialorder %v547, inf
    %v578 = vsel %vm577, %v547, %v576
    %vm579 = vcmp.eq.f32.partialorder %v547, 0.0
    %v580 = vand.u32 %v547, 2147483648
    %v581 = vsel %vm579, %v580, %v578
    %v582 = vrsqrt.pop %v548
    %v583 = vmul.f32 %v548, %v582
    %vm584 = vcmp.eq.f32.partialorder %v548, inf
    %v585 = vsel %vm584, %v548, %v583
    %vm586 = vcmp.eq.f32.partialorder %v548, 0.0
    %v587 = vand.u32 %v548, 2147483648
    %v588 = vsel %vm586, %v587, %v585
    %v589 = vrsqrt.pop %v549
    %v590 = vmul.f32 %v549, %v589
    %vm591 = vcmp.eq.f32.partialorder %v549, inf
    %v592 = vsel %vm591, %v549, %v590
    %vm593 = vcmp.eq.f32.partialorder %v549, 0.0
    %v594 = vand.u32 %v549, 2147483648
    %v595 = vsel %vm593, %v594, %v592
    %v596 = vrsqrt.pop %v550
    %v597 = vmul.f32 %v550, %v596
    %vm598 = vcmp.eq.f32.partialorder %v550, inf
    %v599 = vsel %vm598, %v550, %v597
    %vm600 = vcmp.eq.f32.partialorder %v550, 0.0
    %v601 = vand.u32 %v550, 2147483648
    %v602 = vsel %vm600, %v601, %v599
    %v603 = vrsqrt.pop %v551
    %v604 = vmul.f32 %v551, %v603
    %vm605 = vcmp.eq.f32.partialorder %v551, inf
    %v606 = vsel %vm605, %v551, %v604
    %vm607 = vcmp.eq.f32.partialorder %v551, 0.0
    %v608 = vand.u32 %v551, 2147483648
    %v609 = vsel %vm607, %v608, %v606
    %v610 = vrsqrt.pop %v552
    %v611 = vmul.f32 %v552, %v610
    %vm612 = vcmp.eq.f32.partialorder %v552, inf
    %v613 = vsel %vm612, %v552, %v611
    %vm614 = vcmp.eq.f32.partialorder %v552, 0.0
    %v615 = vand.u32 %v552, 2147483648
    %v616 = vsel %vm614, %v615, %v613
    %v617 = vrsqrt.pop %v553
    %v618 = vmul.f32 %v553, %v617
    %vm619 = vcmp.eq.f32.partialorder %v553, inf
    %v620 = vsel %vm619, %v553, %v618
    %vm621 = vcmp.eq.f32.partialorder %v553, 0.0
    %v622 = vand.u32 %v553, 2147483648
    %v623 = vsel %vm621, %v622, %v620
    %v624 = vrsqrt.pop %v554
    %v625 = vmul.f32 %v554, %v624
    %vm626 = vcmp.eq.f32.partialorder %v554, inf
    %v627 = vsel %vm626, %v554, %v625
    %vm628 = vcmp.eq.f32.partialorder %v554, 0.0
    %v629 = vand.u32 %v554, 2147483648
    %v630 = vsel %vm628, %v629, %v627
    %v631 = vrsqrt.pop %v555
    %v632 = vmul.f32 %v555, %v631
    %vm633 = vcmp.eq.f32.partialorder %v555, inf
    %v634 = vsel %vm633, %v555, %v632
    %vm635 = vcmp.eq.f32.partialorder %v555, 0.0
    %v636 = vand.u32 %v555, 2147483648
    %v637 = vsel %vm635, %v636, %v634
    %v638 = vrsqrt.pop %v556
    %v639 = vmul.f32 %v556, %v638
    %vm640 = vcmp.eq.f32.partialorder %v556, inf
    %v641 = vsel %vm640, %v556, %v639
    %vm642 = vcmp.eq.f32.partialorder %v556, 0.0
    %v643 = vand.u32 %v556, 2147483648
    %v644 = vsel %vm642, %v643, %v641
    %v645 = vrsqrt.pop %v557
    %v646 = vmul.f32 %v557, %v645
    %vm647 = vcmp.eq.f32.partialorder %v557, inf
    %v648 = vsel %vm647, %v557, %v646
    %vm649 = vcmp.eq.f32.partialorder %v557, 0.0
    %v650 = vand.u32 %v557, 2147483648
    %v651 = vsel %vm649, %v650, %v648
    %v652 = vrsqrt.pop %v558
    %v653 = vmul.f32 %v558, %v652
    %vm654 = vcmp.eq.f32.partialorder %v558, inf
    %v655 = vsel %vm654, %v558, %v653
    %vm656 = vcmp.eq.f32.partialorder %v558, 0.0
    %v657 = vand.u32 %v558, 2147483648
    %v658 = vsel %vm656, %v657, %v655
    %v659 = vrsqrt.pop %v559
    %v660 = vmul.f32 %v559, %v659
    %vm661 = vcmp.eq.f32.partialorder %v559, inf
    %v662 = vsel %vm661, %v559, %v660
    %vm663 = vcmp.eq.f32.partialorder %v559, 0.0
    %v664 = vand.u32 %v559, 2147483648
    %v665 = vsel %vm663, %v664, %v662
    %v666 = vrsqrt.pop %v560
    %v667 = vmul.f32 %v560, %v666
    %vm668 = vcmp.eq.f32.partialorder %v560, inf
    %v669 = vsel %vm668, %v560, %v667
    %vm670 = vcmp.eq.f32.partialorder %v560, 0.0
    %v671 = vand.u32 %v560, 2147483648
    %v672 = vsel %vm670, %v671, %v669
    %v673 = vmul.f32 %v497, 6.2831855
    %v674 = vmul.f32 %v498, 6.2831855
    %v675 = vmul.f32 %v499, 6.2831855
    %v676 = vmul.f32 %v500, 6.2831855
    %v677 = vmul.f32 %v501, 6.2831855
    %v678 = vmul.f32 %v502, 6.2831855
    %v679 = vmul.f32 %v503, 6.2831855
    %v680 = vmul.f32 %v504, 6.2831855
    %v681 = vmul.f32 %v505, 6.2831855
    %v682 = vmul.f32 %v506, 6.2831855
    %v683 = vmul.f32 %v507, 6.2831855
    %v684 = vmul.f32 %v508, 6.2831855
    %v685 = vmul.f32 %v509, 6.2831855
    %v686 = vmul.f32 %v510, 6.2831855
    %v687 = vmul.f32 %v511, 6.2831855
    %v688 = vmul.f32 %v512, 6.2831855
    %v689 = vand.u32 2147483647, %v673
    %vm690 = vcmp.le.f32.partialorder %v689, 0.7853982
    %vm691 = vcmp.lt.s32.totalorder %v673, 0
    %v692 = vand.u32 %v673, 2139095040
    %v693 = vshrl.u32 %v692, 23
    %v694 = vsub.s32 %v693, 127
    %v695 = vand.u32 2147483647, %v673
    %v696 = vand.u32 %v695, 8388607
    %v697 = vor.u32 %v696, 8388608
    %v698 = vsub.s32 0, %v697
    %v699 = vadd.s32 %v694, 1
    %vm700 = vcmp.gt.s32.totalorder %v699, 0
    %v701 = vsel %vm700, %v699, 0
    %v702 = vshrl.u32 %v701, 5
    %v703 = vand.u32 %v701, 31
    %v704 = vsub.s32 32, %v703
    %v705 = vshrl.u32 683565275, %v704
    %v706 = vshll.u32 683565275, %v703
    %v707 = vshrl.u32 2475754826, %v704
    %v708 = vor.u32 %v706, %v707
    %v709 = vshll.u32 2475754826, %v703
    %v710 = vshrl.u32 2131351028, %v704
    %v711 = vor.u32 %v709, %v710
    %v712 = vshll.u32 2131351028, %v703
    %v713 = vshrl.u32 2102212464, %v704
    %v714 = vor.u32 %v712, %v713
    %v715 = vshll.u32 2102212464, %v703
    %v716 = vshrl.u32 920167782, %v704
    %v717 = vor.u32 %v715, %v716
    %v718 = vshll.u32 920167782, %v703
    %v719 = vshrl.u32 1326507024, %v704
    %v720 = vor.u32 %v718, %v719
    %vm721 = vcmp.lt.s32.totalorder %v702, 1
    %vm722 = vcmp.lt.s32.totalorder %v702, 2
    %vm723 = vcmp.lt.s32.totalorder %v702, 3
    %vm724 = vcmp.lt.s32.totalorder %v702, 4
    %v725 = vsel %vm721, %v705, %v708
    %v726 = vsel %vm724, %v714, 2102212464
    %v727 = vsel %vm723, %v711, %v726
    %v728 = vsel %vm722, %v725, %v727
    %v729 = vsel %vm721, %v708, %v711
    %v730 = vsel %vm724, %v717, 920167782
    %v731 = vsel %vm723, %v714, %v730
    %v732 = vsel %vm722, %v729, %v731
    %v733 = vsel %vm721, %v711, %v714
    %v734 = vsel %vm724, %v720, 1326507024
    %v735 = vsel %vm723, %v717, %v734
    %v736 = vsel %vm722, %v733, %v735
    %v737 = vshll.u32 %v697, 8
    %v738 = vmul.u32.u64.compose %v737, %v736
    %v739 = vextract.low.u32 %v738
    %v740 = vextract.high.u32 %v738
    %v741 = vmul.u32.u64.compose %v737, %v732
    %v742 = vextract.low.u32 %v741
    %v743 = vextract.high.u32 %v741
    %v744 = vmul.u32 %v737, %v728
    %v745 = vadd.s32 %v740, %v742
    %vm746 = vc.u32 %v740, %v742
    %v747 = vadd.s32 %v743, 1
    %v748 = vsel %vm746, %v747, %v743
    %v749 = vadd.s32 %v744, %v748
    %v750 = vadd.s32 %v749, 536870912
    %v751 = vshrl.u32 %v750, 30
    %v752 = vshll.u32 %v751, 30
    %v753 = vsub.s32 %v749, %v752
    %vm754 = vcmp.lt.s32.totalorder %v753, 0
    %v755 = vsub.s32 0, %v753
    %v756 = vsel %vm754, %v755, %v753
    %v757 = vclz %v756
    %v758 = vsub.s32 %v757, 2
    %vm759 = vcmp.gt.s32.totalorder 0, %v758
    %v760 = vsel %vm759, 0, %v758
    %v761 = vsub.s32 32, %v760
    %v762 = vshll.u32 %v753, %v760
    %v763 = vshrl.u32 %v745, %v761
    %v764 = vor.u32 %v762, %v763
    %v765 = vsub.s32 4294967266, %v760
    %v766 = vadd.s32 %v765, 127
    %v767 = vshll.u32 %v766, 23
    %v768 = vor.u32 4788187, %v767
    %v769 = vand.u32 2147483647, %v768
    %v771 = vcvt.s32.f32 %v764
    %v772 = vmul.f32 %v771, %v769
    %v773 = vxor.u32 %v772, 2147483648
    %v774 = vsel %vm691, %v773, %v772
    %v775 = vsub.s32 4, %v751
    %v776 = vsel %vm691, %v775, %v751
    %v777 = vsel %vm690, %v673, %v774
    %v778 = vsel %vm690, 0, %v776
    %v779 = vcosq.f32.pop %v777
    %v780 = vsinq.f32.pop %v777
    %vm781 = vweird.f32 %v673
    %v782 = vand.u32 %v778, 3
    %vm783 = vcmp.lt.s32.totalorder %v782, 2
    %vm784 = vcmp.eq.s32.totalorder %v782, 0
    %v785 = vxor.u32 %v780, 2147483648
    %v786 = vsel %vm784, %v779, %v785
    %vm787 = vcmp.eq.s32.totalorder %v782, 2
    %v788 = vxor.u32 %v779, 2147483648
    %v789 = vsel %vm787, %v788, %v780
    %v790 = vsel %vm783, %v786, %v789
    %v791 = vsel %vm781, nan, %v790
    %v792 = vand.u32 2147483647, %v674
    %vm793 = vcmp.le.f32.partialorder %v792, 0.7853982
    %vm794 = vcmp.lt.s32.totalorder %v674, 0
    %v795 = vand.u32 %v674, 2139095040
    %v796 = vshrl.u32 %v795, 23
    %v797 = vsub.s32 %v796, 127
    %v798 = vand.u32 2147483647, %v674
    %v799 = vand.u32 %v798, 8388607
    %v800 = vor.u32 %v799, 8388608
    %v801 = vsub.s32 0, %v800
    %v802 = vadd.s32 %v797, 1
    %vm803 = vcmp.gt.s32.totalorder %v802, 0
    %v804 = vsel %vm803, %v802, 0
    %v805 = vshrl.u32 %v804, 5
    %v806 = vand.u32 %v804, 31
    %v807 = vsub.s32 32, %v806
    %v808 = vshrl.u32 683565275, %v807
    %v809 = vshll.u32 683565275, %v806
    %v810 = vshrl.u32 2475754826, %v807
    %v811 = vor.u32 %v809, %v810
    %v812 = vshll.u32 2475754826, %v806
    %v813 = vshrl.u32 2131351028, %v807
    %v814 = vor.u32 %v812, %v813
    %v815 = vshll.u32 2131351028, %v806
    %v816 = vshrl.u32 2102212464, %v807
    %v817 = vor.u32 %v815, %v816
    %v818 = vshll.u32 2102212464, %v806
    %v819 = vshrl.u32 920167782, %v807
    %v820 = vor.u32 %v818, %v819
    %v821 = vshll.u32 920167782, %v806
    %v822 = vshrl.u32 1326507024, %v807
    %v823 = vor.u32 %v821, %v822
    %vm824 = vcmp.lt.s32.totalorder %v805, 1
    %vm825 = vcmp.lt.s32.totalorder %v805, 2
    %vm826 = vcmp.lt.s32.totalorder %v805, 3
    %vm827 = vcmp.lt.s32.totalorder %v805, 4
    %v828 = vsel %vm824, %v808, %v811
    %v829 = vsel %vm827, %v817, 2102212464
    %v830 = vsel %vm826, %v814, %v829
    %v831 = vsel %vm825, %v828, %v830
    %v832 = vsel %vm824, %v811, %v814
    %v833 = vsel %vm827, %v820, 920167782
    %v834 = vsel %vm826, %v817, %v833
    %v835 = vsel %vm825, %v832, %v834
    %v836 = vsel %vm824, %v814, %v817
    %v837 = vsel %vm827, %v823, 1326507024
    %v838 = vsel %vm826, %v820, %v837
    %v839 = vsel %vm825, %v836, %v838
    %v840 = vshll.u32 %v800, 8
    %v841 = vmul.u32.u64.compose %v840, %v839
    %v842 = vextract.low.u32 %v841
    %v843 = vextract.high.u32 %v841
    %v844 = vmul.u32.u64.compose %v840, %v835
    %v845 = vextract.low.u32 %v844
    %v846 = vextract.high.u32 %v844
    %v847 = vmul.u32 %v840, %v831
    %v848 = vadd.s32 %v843, %v845
    %vm849 = vc.u32 %v843, %v845
    %v850 = vadd.s32 %v846, 1
    %v851 = vsel %vm849, %v850, %v846
    %v852 = vadd.s32 %v847, %v851
    %v853 = vadd.s32 %v852, 536870912
    %v854 = vshrl.u32 %v853, 30
    %v855 = vshll.u32 %v854, 30
    %v856 = vsub.s32 %v852, %v855
    %vm857 = vcmp.lt.s32.totalorder %v856, 0
    %v858 = vsub.s32 0, %v856
    %v859 = vsel %vm857, %v858, %v856
    %v860 = vclz %v859
    %v861 = vsub.s32 %v860, 2
    %vm862 = vcmp.gt.s32.totalorder 0, %v861
    %v863 = vsel %vm862, 0, %v861
    %v864 = vsub.s32 32, %v863
    %v865 = vshll.u32 %v856, %v863
    %v866 = vshrl.u32 %v848, %v864
    %v867 = vor.u32 %v865, %v866
    %v868 = vsub.s32 4294967266, %v863
    %v869 = vadd.s32 %v868, 127
    %v870 = vshll.u32 %v869, 23
    %v871 = vor.u32 4788187, %v870
    %v872 = vand.u32 2147483647, %v871
    %v874 = vcvt.s32.f32 %v867
    %v875 = vmul.f32 %v874, %v872
    %v876 = vxor.u32 %v875, 2147483648
    %v877 = vsel %vm794, %v876, %v875
    %v878 = vsub.s32 4, %v854
    %v879 = vsel %vm794, %v878, %v854
    %v880 = vsel %vm793, %v674, %v877
    %v881 = vsel %vm793, 0, %v879
    %v882 = vcosq.f32.pop %v880
    %v883 = vsinq.f32.pop %v880
    %vm884 = vweird.f32 %v674
    %v885 = vand.u32 %v881, 3
    %vm886 = vcmp.lt.s32.totalorder %v885, 2
    %vm887 = vcmp.eq.s32.totalorder %v885, 0
    %v888 = vxor.u32 %v883, 2147483648
    %v889 = vsel %vm887, %v882, %v888
    %vm890 = vcmp.eq.s32.totalorder %v885, 2
    %v891 = vxor.u32 %v882, 2147483648
    %v892 = vsel %vm890, %v891, %v883
    %v893 = vsel %vm886, %v889, %v892
    %v894 = vsel %vm884, nan, %v893
    %v895 = vand.u32 2147483647, %v675
    %vm896 = vcmp.le.f32.partialorder %v895, 0.7853982
    %vm897 = vcmp.lt.s32.totalorder %v675, 0
    %v898 = vand.u32 %v675, 2139095040
    %v899 = vshrl.u32 %v898, 23
    %v900 = vsub.s32 %v899, 127
    %v901 = vand.u32 2147483647, %v675
    %v902 = vand.u32 %v901, 8388607
    %v903 = vor.u32 %v902, 8388608
    %v904 = vsub.s32 0, %v903
    %v905 = vadd.s32 %v900, 1
    %vm906 = vcmp.gt.s32.totalorder %v905, 0
    %v907 = vsel %vm906, %v905, 0
    %v908 = vshrl.u32 %v907, 5
    %v909 = vand.u32 %v907, 31
    %v910 = vsub.s32 32, %v909
    %v911 = vshrl.u32 683565275, %v910
    %v912 = vshll.u32 683565275, %v909
    %v913 = vshrl.u32 2475754826, %v910
    %v914 = vor.u32 %v912, %v913
    %v915 = vshll.u32 2475754826, %v909
    %v916 = vshrl.u32 2131351028, %v910
    %v917 = vor.u32 %v915, %v916
    %v918 = vshll.u32 2131351028, %v909
    %v919 = vshrl.u32 2102212464, %v910
    %v920 = vor.u32 %v918, %v919
    %v921 = vshll.u32 2102212464, %v909
    %v922 = vshrl.u32 920167782, %v910
    %v923 = vor.u32 %v921, %v922
    %v924 = vshll.u32 920167782, %v909
    %v925 = vshrl.u32 1326507024, %v910
    %v926 = vor.u32 %v924, %v925
    %vm927 = vcmp.lt.s32.totalorder %v908, 1
    %vm928 = vcmp.lt.s32.totalorder %v908, 2
    %vm929 = vcmp.lt.s32.totalorder %v908, 3
    %vm930 = vcmp.lt.s32.totalorder %v908, 4
    %v931 = vsel %vm927, %v911, %v914
    %v932 = vsel %vm930, %v920, 2102212464
    %v933 = vsel %vm929, %v917, %v932
    %v934 = vsel %vm928, %v931, %v933
    %v935 = vsel %vm927, %v914, %v917
    %v936 = vsel %vm930, %v923, 920167782
    %v937 = vsel %vm929, %v920, %v936
    %v938 = vsel %vm928, %v935, %v937
    %v939 = vsel %vm927, %v917, %v920
    %v940 = vsel %vm930, %v926, 1326507024
    %v941 = vsel %vm929, %v923, %v940
    %v942 = vsel %vm928, %v939, %v941
    %v943 = vshll.u32 %v903, 8
    %v944 = vmul.u32.u64.compose %v943, %v942
    %v945 = vextract.low.u32 %v944
    %v946 = vextract.high.u32 %v944
    %v947 = vmul.u32.u64.compose %v943, %v938
    %v948 = vextract.low.u32 %v947
    %v949 = vextract.high.u32 %v947
    %v950 = vmul.u32 %v943, %v934
    %v951 = vadd.s32 %v946, %v948
    %vm952 = vc.u32 %v946, %v948
    %v953 = vadd.s32 %v949, 1
    %v954 = vsel %vm952, %v953, %v949
    %v955 = vadd.s32 %v950, %v954
    %v956 = vadd.s32 %v955, 536870912
    %v957 = vshrl.u32 %v956, 30
    %v958 = vshll.u32 %v957, 30
    %v959 = vsub.s32 %v955, %v958
    %vm960 = vcmp.lt.s32.totalorder %v959, 0
    %v961 = vsub.s32 0, %v959
    %v962 = vsel %vm960, %v961, %v959
    %v963 = vclz %v962
    %v964 = vsub.s32 %v963, 2
    %vm965 = vcmp.gt.s32.totalorder 0, %v964
    %v966 = vsel %vm965, 0, %v964
    %v967 = vsub.s32 32, %v966
    %v968 = vshll.u32 %v959, %v966
    %v969 = vshrl.u32 %v951, %v967
    %v970 = vor.u32 %v968, %v969
    %v971 = vsub.s32 4294967266, %v966
    %v972 = vadd.s32 %v971, 127
    %v973 = vshll.u32 %v972, 23
    %v974 = vor.u32 4788187, %v973
    %v975 = vand.u32 2147483647, %v974
    %v977 = vcvt.s32.f32 %v970
    %v978 = vmul.f32 %v977, %v975
    %v979 = vxor.u32 %v978, 2147483648
    %v980 = vsel %vm897, %v979, %v978
    %v981 = vsub.s32 4, %v957
    %v982 = vsel %vm897, %v981, %v957
    %v983 = vsel %vm896, %v675, %v980
    %v984 = vsel %vm896, 0, %v982
    %v985 = vcosq.f32.pop %v983
    %v986 = vsinq.f32.pop %v983
    %vm987 = vweird.f32 %v675
    %v988 = vand.u32 %v984, 3
    %vm989 = vcmp.lt.s32.totalorder %v988, 2
    %vm990 = vcmp.eq.s32.totalorder %v988, 0
    %v991 = vxor.u32 %v986, 2147483648
    %v992 = vsel %vm990, %v985, %v991
    %vm993 = vcmp.eq.s32.totalorder %v988, 2
    %v994 = vxor.u32 %v985, 2147483648
    %v995 = vsel %vm993, %v994, %v986
    %v996 = vsel %vm989, %v992, %v995
    %v997 = vsel %vm987, nan, %v996
    %v998 = vand.u32 2147483647, %v676
    %vm999 = vcmp.le.f32.partialorder %v998, 0.7853982
    %vm1000 = vcmp.lt.s32.totalorder %v676, 0
    %v1001 = vand.u32 %v676, 2139095040
    %v1002 = vshrl.u32 %v1001, 23
    %v1003 = vsub.s32 %v1002, 127
    %v1004 = vand.u32 2147483647, %v676
    %v1005 = vand.u32 %v1004, 8388607
    %v1006 = vor.u32 %v1005, 8388608
    %v1007 = vsub.s32 0, %v1006
    %v1008 = vadd.s32 %v1003, 1
    %vm1009 = vcmp.gt.s32.totalorder %v1008, 0
    %v1010 = vsel %vm1009, %v1008, 0
    %v1011 = vshrl.u32 %v1010, 5
    %v1012 = vand.u32 %v1010, 31
    %v1013 = vsub.s32 32, %v1012
    %v1014 = vshrl.u32 683565275, %v1013
    %v1015 = vshll.u32 683565275, %v1012
    %v1016 = vshrl.u32 2475754826, %v1013
    %v1017 = vor.u32 %v1015, %v1016
    %v1018 = vshll.u32 2475754826, %v1012
    %v1019 = vshrl.u32 2131351028, %v1013
    %v1020 = vor.u32 %v1018, %v1019
    %v1021 = vshll.u32 2131351028, %v1012
    %v1022 = vshrl.u32 2102212464, %v1013
    %v1023 = vor.u32 %v1021, %v1022
    %v1024 = vshll.u32 2102212464, %v1012
    %v1025 = vshrl.u32 920167782, %v1013
    %v1026 = vor.u32 %v1024, %v1025
    %v1027 = vshll.u32 920167782, %v1012
    %v1028 = vshrl.u32 1326507024, %v1013
    %v1029 = vor.u32 %v1027, %v1028
    %vm1030 = vcmp.lt.s32.totalorder %v1011, 1
    %vm1031 = vcmp.lt.s32.totalorder %v1011, 2
    %vm1032 = vcmp.lt.s32.totalorder %v1011, 3
    %vm1033 = vcmp.lt.s32.totalorder %v1011, 4
    %v1034 = vsel %vm1030, %v1014, %v1017
    %v1035 = vsel %vm1033, %v1023, 2102212464
    %v1036 = vsel %vm1032, %v1020, %v1035
    %v1037 = vsel %vm1031, %v1034, %v1036
    %v1038 = vsel %vm1030, %v1017, %v1020
    %v1039 = vsel %vm1033, %v1026, 920167782
    %v1040 = vsel %vm1032, %v1023, %v1039
    %v1041 = vsel %vm1031, %v1038, %v1040
    %v1042 = vsel %vm1030, %v1020, %v1023
    %v1043 = vsel %vm1033, %v1029, 1326507024
    %v1044 = vsel %vm1032, %v1026, %v1043
    %v1045 = vsel %vm1031, %v1042, %v1044
    %v1046 = vshll.u32 %v1006, 8
    %v1047 = vmul.u32.u64.compose %v1046, %v1045
    %v1048 = vextract.low.u32 %v1047
    %v1049 = vextract.high.u32 %v1047
    %v1050 = vmul.u32.u64.compose %v1046, %v1041
    %v1051 = vextract.low.u32 %v1050
    %v1052 = vextract.high.u32 %v1050
    %v1053 = vmul.u32 %v1046, %v1037
    %v1054 = vadd.s32 %v1049, %v1051
    %vm1055 = vc.u32 %v1049, %v1051
    %v1056 = vadd.s32 %v1052, 1
    %v1057 = vsel %vm1055, %v1056, %v1052
    %v1058 = vadd.s32 %v1053, %v1057
    %v1059 = vadd.s32 %v1058, 536870912
    %v1060 = vshrl.u32 %v1059, 30
    %v1061 = vshll.u32 %v1060, 30
    %v1062 = vsub.s32 %v1058, %v1061
    %vm1063 = vcmp.lt.s32.totalorder %v1062, 0
    %v1064 = vsub.s32 0, %v1062
    %v1065 = vsel %vm1063, %v1064, %v1062
    %v1066 = vclz %v1065
    %v1067 = vsub.s32 %v1066, 2
    %vm1068 = vcmp.gt.s32.totalorder 0, %v1067
    %v1069 = vsel %vm1068, 0, %v1067
    %v1070 = vsub.s32 32, %v1069
    %v1071 = vshll.u32 %v1062, %v1069
    %v1072 = vshrl.u32 %v1054, %v1070
    %v1073 = vor.u32 %v1071, %v1072
    %v1074 = vsub.s32 4294967266, %v1069
    %v1075 = vadd.s32 %v1074, 127
    %v1076 = vshll.u32 %v1075, 23
    %v1077 = vor.u32 4788187, %v1076
    %v1078 = vand.u32 2147483647, %v1077
    %v1080 = vcvt.s32.f32 %v1073
    %v1081 = vmul.f32 %v1080, %v1078
    %v1082 = vxor.u32 %v1081, 2147483648
    %v1083 = vsel %vm1000, %v1082, %v1081
    %v1084 = vsub.s32 4, %v1060
    %v1085 = vsel %vm1000, %v1084, %v1060
    %v1086 = vsel %vm999, %v676, %v1083
    %v1087 = vsel %vm999, 0, %v1085
    %v1088 = vcosq.f32.pop %v1086
    %v1089 = vsinq.f32.pop %v1086
    %vm1090 = vweird.f32 %v676
    %v1091 = vand.u32 %v1087, 3
    %vm1092 = vcmp.lt.s32.totalorder %v1091, 2
    %vm1093 = vcmp.eq.s32.totalorder %v1091, 0
    %v1094 = vxor.u32 %v1089, 2147483648
    %v1095 = vsel %vm1093, %v1088, %v1094
    %vm1096 = vcmp.eq.s32.totalorder %v1091, 2
    %v1097 = vxor.u32 %v1088, 2147483648
    %v1098 = vsel %vm1096, %v1097, %v1089
    %v1099 = vsel %vm1092, %v1095, %v1098
    %v1100 = vsel %vm1090, nan, %v1099
    %v1101 = vand.u32 2147483647, %v677
    %vm1102 = vcmp.le.f32.partialorder %v1101, 0.7853982
    %vm1103 = vcmp.lt.s32.totalorder %v677, 0
    %v1104 = vand.u32 %v677, 2139095040
    %v1105 = vshrl.u32 %v1104, 23
    %v1106 = vsub.s32 %v1105, 127
    %v1107 = vand.u32 2147483647, %v677
    %v1108 = vand.u32 %v1107, 8388607
    %v1109 = vor.u32 %v1108, 8388608
    %v1110 = vsub.s32 0, %v1109
    %v1111 = vadd.s32 %v1106, 1
    %vm1112 = vcmp.gt.s32.totalorder %v1111, 0
    %v1113 = vsel %vm1112, %v1111, 0
    %v1114 = vshrl.u32 %v1113, 5
    %v1115 = vand.u32 %v1113, 31
    %v1116 = vsub.s32 32, %v1115
    %v1117 = vshrl.u32 683565275, %v1116
    %v1118 = vshll.u32 683565275, %v1115
    %v1119 = vshrl.u32 2475754826, %v1116
    %v1120 = vor.u32 %v1118, %v1119
    %v1121 = vshll.u32 2475754826, %v1115
    %v1122 = vshrl.u32 2131351028, %v1116
    %v1123 = vor.u32 %v1121, %v1122
    %v1124 = vshll.u32 2131351028, %v1115
    %v1125 = vshrl.u32 2102212464, %v1116
    %v1126 = vor.u32 %v1124, %v1125
    %v1127 = vshll.u32 2102212464, %v1115
    %v1128 = vshrl.u32 920167782, %v1116
    %v1129 = vor.u32 %v1127, %v1128
    %v1130 = vshll.u32 920167782, %v1115
    %v1131 = vshrl.u32 1326507024, %v1116
    %v1132 = vor.u32 %v1130, %v1131
    %vm1133 = vcmp.lt.s32.totalorder %v1114, 1
    %vm1134 = vcmp.lt.s32.totalorder %v1114, 2
    %vm1135 = vcmp.lt.s32.totalorder %v1114, 3
    %vm1136 = vcmp.lt.s32.totalorder %v1114, 4
    %v1137 = vsel %vm1133, %v1117, %v1120
    %v1138 = vsel %vm1136, %v1126, 2102212464
    %v1139 = vsel %vm1135, %v1123, %v1138
    %v1140 = vsel %vm1134, %v1137, %v1139
    %v1141 = vsel %vm1133, %v1120, %v1123
    %v1142 = vsel %vm1136, %v1129, 920167782
    %v1143 = vsel %vm1135, %v1126, %v1142
    %v1144 = vsel %vm1134, %v1141, %v1143
    %v1145 = vsel %vm1133, %v1123, %v1126
    %v1146 = vsel %vm1136, %v1132, 1326507024
    %v1147 = vsel %vm1135, %v1129, %v1146
    %v1148 = vsel %vm1134, %v1145, %v1147
    %v1149 = vshll.u32 %v1109, 8
    %v1150 = vmul.u32.u64.compose %v1149, %v1148
    %v1151 = vextract.low.u32 %v1150
    %v1152 = vextract.high.u32 %v1150
    %v1153 = vmul.u32.u64.compose %v1149, %v1144
    %v1154 = vextract.low.u32 %v1153
    %v1155 = vextract.high.u32 %v1153
    %v1156 = vmul.u32 %v1149, %v1140
    %v1157 = vadd.s32 %v1152, %v1154
    %vm1158 = vc.u32 %v1152, %v1154
    %v1159 = vadd.s32 %v1155, 1
    %v1160 = vsel %vm1158, %v1159, %v1155
    %v1161 = vadd.s32 %v1156, %v1160
    %v1162 = vadd.s32 %v1161, 536870912
    %v1163 = vshrl.u32 %v1162, 30
    %v1164 = vshll.u32 %v1163, 30
    %v1165 = vsub.s32 %v1161, %v1164
    %vm1166 = vcmp.lt.s32.totalorder %v1165, 0
    %v1167 = vsub.s32 0, %v1165
    %v1168 = vsel %vm1166, %v1167, %v1165
    %v1169 = vclz %v1168
    %v1170 = vsub.s32 %v1169, 2
    %vm1171 = vcmp.gt.s32.totalorder 0, %v1170
    %v1172 = vsel %vm1171, 0, %v1170
    %v1173 = vsub.s32 32, %v1172
    %v1174 = vshll.u32 %v1165, %v1172
    %v1175 = vshrl.u32 %v1157, %v1173
    %v1176 = vor.u32 %v1174, %v1175
    %v1177 = vsub.s32 4294967266, %v1172
    %v1178 = vadd.s32 %v1177, 127
    %v1179 = vshll.u32 %v1178, 23
    %v1180 = vor.u32 4788187, %v1179
    %v1181 = vand.u32 2147483647, %v1180
    %v1183 = vcvt.s32.f32 %v1176
    %v1184 = vmul.f32 %v1183, %v1181
    %v1185 = vxor.u32 %v1184, 2147483648
    %v1186 = vsel %vm1103, %v1185, %v1184
    %v1187 = vsub.s32 4, %v1163
    %v1188 = vsel %vm1103, %v1187, %v1163
    %v1189 = vsel %vm1102, %v677, %v1186
    %v1190 = vsel %vm1102, 0, %v1188
    %v1191 = vcosq.f32.pop %v1189
    %v1192 = vsinq.f32.pop %v1189
    %vm1193 = vweird.f32 %v677
    %v1194 = vand.u32 %v1190, 3
    %vm1195 = vcmp.lt.s32.totalorder %v1194, 2
    %vm1196 = vcmp.eq.s32.totalorder %v1194, 0
    %v1197 = vxor.u32 %v1192, 2147483648
    %v1198 = vsel %vm1196, %v1191, %v1197
    %vm1199 = vcmp.eq.s32.totalorder %v1194, 2
    %v1200 = vxor.u32 %v1191, 2147483648
    %v1201 = vsel %vm1199, %v1200, %v1192
    %v1202 = vsel %vm1195, %v1198, %v1201
    %v1203 = vsel %vm1193, nan, %v1202
    %v1204 = vand.u32 2147483647, %v678
    %vm1205 = vcmp.le.f32.partialorder %v1204, 0.7853982
    %vm1206 = vcmp.lt.s32.totalorder %v678, 0
    %v1207 = vand.u32 %v678, 2139095040
    %v1208 = vshrl.u32 %v1207, 23
    %v1209 = vsub.s32 %v1208, 127
    %v1210 = vand.u32 2147483647, %v678
    %v1211 = vand.u32 %v1210, 8388607
    %v1212 = vor.u32 %v1211, 8388608
    %v1213 = vsub.s32 0, %v1212
    %v1214 = vadd.s32 %v1209, 1
    %vm1215 = vcmp.gt.s32.totalorder %v1214, 0
    %v1216 = vsel %vm1215, %v1214, 0
    %v1217 = vshrl.u32 %v1216, 5
    %v1218 = vand.u32 %v1216, 31
    %v1219 = vsub.s32 32, %v1218
    %v1220 = vshrl.u32 683565275, %v1219
    %v1221 = vshll.u32 683565275, %v1218
    %v1222 = vshrl.u32 2475754826, %v1219
    %v1223 = vor.u32 %v1221, %v1222
    %v1224 = vshll.u32 2475754826, %v1218
    %v1225 = vshrl.u32 2131351028, %v1219
    %v1226 = vor.u32 %v1224, %v1225
    %v1227 = vshll.u32 2131351028, %v1218
    %v1228 = vshrl.u32 2102212464, %v1219
    %v1229 = vor.u32 %v1227, %v1228
    %v1230 = vshll.u32 2102212464, %v1218
    %v1231 = vshrl.u32 920167782, %v1219
    %v1232 = vor.u32 %v1230, %v1231
    %v1233 = vshll.u32 920167782, %v1218
    %v1234 = vshrl.u32 1326507024, %v1219
    %v1235 = vor.u32 %v1233, %v1234
    %vm1236 = vcmp.lt.s32.totalorder %v1217, 1
    %vm1237 = vcmp.lt.s32.totalorder %v1217, 2
    %vm1238 = vcmp.lt.s32.totalorder %v1217, 3
    %vm1239 = vcmp.lt.s32.totalorder %v1217, 4
    %v1240 = vsel %vm1236, %v1220, %v1223
    %v1241 = vsel %vm1239, %v1229, 2102212464
    %v1242 = vsel %vm1238, %v1226, %v1241
    %v1243 = vsel %vm1237, %v1240, %v1242
    %v1244 = vsel %vm1236, %v1223, %v1226
    %v1245 = vsel %vm1239, %v1232, 920167782
    %v1246 = vsel %vm1238, %v1229, %v1245
    %v1247 = vsel %vm1237, %v1244, %v1246
    %v1248 = vsel %vm1236, %v1226, %v1229
    %v1249 = vsel %vm1239, %v1235, 1326507024
    %v1250 = vsel %vm1238, %v1232, %v1249
    %v1251 = vsel %vm1237, %v1248, %v1250
    %v1252 = vshll.u32 %v1212, 8
    %v1253 = vmul.u32.u64.compose %v1252, %v1251
    %v1254 = vextract.low.u32 %v1253
    %v1255 = vextract.high.u32 %v1253
    %v1256 = vmul.u32.u64.compose %v1252, %v1247
    %v1257 = vextract.low.u32 %v1256
    %v1258 = vextract.high.u32 %v1256
    %v1259 = vmul.u32 %v1252, %v1243
    %v1260 = vadd.s32 %v1255, %v1257
    %vm1261 = vc.u32 %v1255, %v1257
    %v1262 = vadd.s32 %v1258, 1
    %v1263 = vsel %vm1261, %v1262, %v1258
    %v1264 = vadd.s32 %v1259, %v1263
    %v1265 = vadd.s32 %v1264, 536870912
    %v1266 = vshrl.u32 %v1265, 30
    %v1267 = vshll.u32 %v1266, 30
    %v1268 = vsub.s32 %v1264, %v1267
    %vm1269 = vcmp.lt.s32.totalorder %v1268, 0
    %v1270 = vsub.s32 0, %v1268
    %v1271 = vsel %vm1269, %v1270, %v1268
    %v1272 = vclz %v1271
    %v1273 = vsub.s32 %v1272, 2
    %vm1274 = vcmp.gt.s32.totalorder 0, %v1273
    %v1275 = vsel %vm1274, 0, %v1273
    %v1276 = vsub.s32 32, %v1275
    %v1277 = vshll.u32 %v1268, %v1275
    %v1278 = vshrl.u32 %v1260, %v1276
    %v1279 = vor.u32 %v1277, %v1278
    %v1280 = vsub.s32 4294967266, %v1275
    %v1281 = vadd.s32 %v1280, 127
    %v1282 = vshll.u32 %v1281, 23
    %v1283 = vor.u32 4788187, %v1282
    %v1284 = vand.u32 2147483647, %v1283
    %v1286 = vcvt.s32.f32 %v1279
    %v1287 = vmul.f32 %v1286, %v1284
    %v1288 = vxor.u32 %v1287, 2147483648
    %v1289 = vsel %vm1206, %v1288, %v1287
    %v1290 = vsub.s32 4, %v1266
    %v1291 = vsel %vm1206, %v1290, %v1266
    %v1292 = vsel %vm1205, %v678, %v1289
    %v1293 = vsel %vm1205, 0, %v1291
    %v1294 = vcosq.f32.pop %v1292
    %v1295 = vsinq.f32.pop %v1292
    %vm1296 = vweird.f32 %v678
    %v1297 = vand.u32 %v1293, 3
    %vm1298 = vcmp.lt.s32.totalorder %v1297, 2
    %vm1299 = vcmp.eq.s32.totalorder %v1297, 0
    %v1300 = vxor.u32 %v1295, 2147483648
    %v1301 = vsel %vm1299, %v1294, %v1300
    %vm1302 = vcmp.eq.s32.totalorder %v1297, 2
    %v1303 = vxor.u32 %v1294, 2147483648
    %v1304 = vsel %vm1302, %v1303, %v1295
    %v1305 = vsel %vm1298, %v1301, %v1304
    %v1306 = vsel %vm1296, nan, %v1305
    %v1307 = vand.u32 2147483647, %v679
    %vm1308 = vcmp.le.f32.partialorder %v1307, 0.7853982
    %vm1309 = vcmp.lt.s32.totalorder %v679, 0
    %v1310 = vand.u32 %v679, 2139095040
    %v1311 = vshrl.u32 %v1310, 23
    %v1312 = vsub.s32 %v1311, 127
    %v1313 = vand.u32 2147483647, %v679
    %v1314 = vand.u32 %v1313, 8388607
    %v1315 = vor.u32 %v1314, 8388608
    %v1316 = vsub.s32 0, %v1315
    %v1317 = vadd.s32 %v1312, 1
    %vm1318 = vcmp.gt.s32.totalorder %v1317, 0
    %v1319 = vsel %vm1318, %v1317, 0
    %v1320 = vshrl.u32 %v1319, 5
    %v1321 = vand.u32 %v1319, 31
    %v1322 = vsub.s32 32, %v1321
    %v1323 = vshrl.u32 683565275, %v1322
    %v1324 = vshll.u32 683565275, %v1321
    %v1325 = vshrl.u32 2475754826, %v1322
    %v1326 = vor.u32 %v1324, %v1325
    %v1327 = vshll.u32 2475754826, %v1321
    %v1328 = vshrl.u32 2131351028, %v1322
    %v1329 = vor.u32 %v1327, %v1328
    %v1330 = vshll.u32 2131351028, %v1321
    %v1331 = vshrl.u32 2102212464, %v1322
    %v1332 = vor.u32 %v1330, %v1331
    %v1333 = vshll.u32 2102212464, %v1321
    %v1334 = vshrl.u32 920167782, %v1322
    %v1335 = vor.u32 %v1333, %v1334
    %v1336 = vshll.u32 920167782, %v1321
    %v1337 = vshrl.u32 1326507024, %v1322
    %v1338 = vor.u32 %v1336, %v1337
    %vm1339 = vcmp.lt.s32.totalorder %v1320, 1
    %vm1340 = vcmp.lt.s32.totalorder %v1320, 2
    %vm1341 = vcmp.lt.s32.totalorder %v1320, 3
    %vm1342 = vcmp.lt.s32.totalorder %v1320, 4
    %v1343 = vsel %vm1339, %v1323, %v1326
    %v1344 = vsel %vm1342, %v1332, 2102212464
    %v1345 = vsel %vm1341, %v1329, %v1344
    %v1346 = vsel %vm1340, %v1343, %v1345
    %v1347 = vsel %vm1339, %v1326, %v1329
    %v1348 = vsel %vm1342, %v1335, 920167782
    %v1349 = vsel %vm1341, %v1332, %v1348
    %v1350 = vsel %vm1340, %v1347, %v1349
    %v1351 = vsel %vm1339, %v1329, %v1332
    %v1352 = vsel %vm1342, %v1338, 1326507024
    %v1353 = vsel %vm1341, %v1335, %v1352
    %v1354 = vsel %vm1340, %v1351, %v1353
    %v1355 = vshll.u32 %v1315, 8
    %v1356 = vmul.u32.u64.compose %v1355, %v1354
    %v1357 = vextract.low.u32 %v1356
    %v1358 = vextract.high.u32 %v1356
    %v1359 = vmul.u32.u64.compose %v1355, %v1350
    %v1360 = vextract.low.u32 %v1359
    %v1361 = vextract.high.u32 %v1359
    %v1362 = vmul.u32 %v1355, %v1346
    %v1363 = vadd.s32 %v1358, %v1360
    %vm1364 = vc.u32 %v1358, %v1360
    %v1365 = vadd.s32 %v1361, 1
    %v1366 = vsel %vm1364, %v1365, %v1361
    %v1367 = vadd.s32 %v1362, %v1366
    %v1368 = vadd.s32 %v1367, 536870912
    %v1369 = vshrl.u32 %v1368, 30
    %v1370 = vshll.u32 %v1369, 30
    %v1371 = vsub.s32 %v1367, %v1370
    %vm1372 = vcmp.lt.s32.totalorder %v1371, 0
    %v1373 = vsub.s32 0, %v1371
    %v1374 = vsel %vm1372, %v1373, %v1371
    %v1375 = vclz %v1374
    %v1376 = vsub.s32 %v1375, 2
    %vm1377 = vcmp.gt.s32.totalorder 0, %v1376
    %v1378 = vsel %vm1377, 0, %v1376
    %v1379 = vsub.s32 32, %v1378
    %v1380 = vshll.u32 %v1371, %v1378
    %v1381 = vshrl.u32 %v1363, %v1379
    %v1382 = vor.u32 %v1380, %v1381
    %v1383 = vsub.s32 4294967266, %v1378
    %v1384 = vadd.s32 %v1383, 127
    %v1385 = vshll.u32 %v1384, 23
    %v1386 = vor.u32 4788187, %v1385
    %v1387 = vand.u32 2147483647, %v1386
    %v1389 = vcvt.s32.f32 %v1382
    %v1390 = vmul.f32 %v1389, %v1387
    %v1391 = vxor.u32 %v1390, 2147483648
    %v1392 = vsel %vm1309, %v1391, %v1390
    %v1393 = vsub.s32 4, %v1369
    %v1394 = vsel %vm1309, %v1393, %v1369
    %v1395 = vsel %vm1308, %v679, %v1392
    %v1396 = vsel %vm1308, 0, %v1394
    %v1397 = vcosq.f32.pop %v1395
    %v1398 = vsinq.f32.pop %v1395
    %vm1399 = vweird.f32 %v679
    %v1400 = vand.u32 %v1396, 3
    %vm1401 = vcmp.lt.s32.totalorder %v1400, 2
    %vm1402 = vcmp.eq.s32.totalorder %v1400, 0
    %v1403 = vxor.u32 %v1398, 2147483648
    %v1404 = vsel %vm1402, %v1397, %v1403
    %vm1405 = vcmp.eq.s32.totalorder %v1400, 2
    %v1406 = vxor.u32 %v1397, 2147483648
    %v1407 = vsel %vm1405, %v1406, %v1398
    %v1408 = vsel %vm1401, %v1404, %v1407
    %v1409 = vsel %vm1399, nan, %v1408
    %v1410 = vand.u32 2147483647, %v680
    %vm1411 = vcmp.le.f32.partialorder %v1410, 0.7853982
    %vm1412 = vcmp.lt.s32.totalorder %v680, 0
    %v1413 = vand.u32 %v680, 2139095040
    %v1414 = vshrl.u32 %v1413, 23
    %v1415 = vsub.s32 %v1414, 127
    %v1416 = vand.u32 2147483647, %v680
    %v1417 = vand.u32 %v1416, 8388607
    %v1418 = vor.u32 %v1417, 8388608
    %v1419 = vsub.s32 0, %v1418
    %v1420 = vadd.s32 %v1415, 1
    %vm1421 = vcmp.gt.s32.totalorder %v1420, 0
    %v1422 = vsel %vm1421, %v1420, 0
    %v1423 = vshrl.u32 %v1422, 5
    %v1424 = vand.u32 %v1422, 31
    %v1425 = vsub.s32 32, %v1424
    %v1426 = vshrl.u32 683565275, %v1425
    %v1427 = vshll.u32 683565275, %v1424
    %v1428 = vshrl.u32 2475754826, %v1425
    %v1429 = vor.u32 %v1427, %v1428
    %v1430 = vshll.u32 2475754826, %v1424
    %v1431 = vshrl.u32 2131351028, %v1425
    %v1432 = vor.u32 %v1430, %v1431
    %v1433 = vshll.u32 2131351028, %v1424
    %v1434 = vshrl.u32 2102212464, %v1425
    %v1435 = vor.u32 %v1433, %v1434
    %v1436 = vshll.u32 2102212464, %v1424
    %v1437 = vshrl.u32 920167782, %v1425
    %v1438 = vor.u32 %v1436, %v1437
    %v1439 = vshll.u32 920167782, %v1424
    %v1440 = vshrl.u32 1326507024, %v1425
    %v1441 = vor.u32 %v1439, %v1440
    %vm1442 = vcmp.lt.s32.totalorder %v1423, 1
    %vm1443 = vcmp.lt.s32.totalorder %v1423, 2
    %vm1444 = vcmp.lt.s32.totalorder %v1423, 3
    %vm1445 = vcmp.lt.s32.totalorder %v1423, 4
    %v1446 = vsel %vm1442, %v1426, %v1429
    %v1447 = vsel %vm1445, %v1435, 2102212464
    %v1448 = vsel %vm1444, %v1432, %v1447
    %v1449 = vsel %vm1443, %v1446, %v1448
    %v1450 = vsel %vm1442, %v1429, %v1432
    %v1451 = vsel %vm1445, %v1438, 920167782
    %v1452 = vsel %vm1444, %v1435, %v1451
    %v1453 = vsel %vm1443, %v1450, %v1452
    %v1454 = vsel %vm1442, %v1432, %v1435
    %v1455 = vsel %vm1445, %v1441, 1326507024
    %v1456 = vsel %vm1444, %v1438, %v1455
    %v1457 = vsel %vm1443, %v1454, %v1456
    %v1458 = vshll.u32 %v1418, 8
    %v1459 = vmul.u32.u64.compose %v1458, %v1457
    %v1460 = vextract.low.u32 %v1459
    %v1461 = vextract.high.u32 %v1459
    %v1462 = vmul.u32.u64.compose %v1458, %v1453
    %v1463 = vextract.low.u32 %v1462
    %v1464 = vextract.high.u32 %v1462
    %v1465 = vmul.u32 %v1458, %v1449
    %v1466 = vadd.s32 %v1461, %v1463
    %vm1467 = vc.u32 %v1461, %v1463
    %v1468 = vadd.s32 %v1464, 1
    %v1469 = vsel %vm1467, %v1468, %v1464
    %v1470 = vadd.s32 %v1465, %v1469
    %v1471 = vadd.s32 %v1470, 536870912
    %v1472 = vshrl.u32 %v1471, 30
    %v1473 = vshll.u32 %v1472, 30
    %v1474 = vsub.s32 %v1470, %v1473
    %vm1475 = vcmp.lt.s32.totalorder %v1474, 0
    %v1476 = vsub.s32 0, %v1474
    %v1477 = vsel %vm1475, %v1476, %v1474
    %v1478 = vclz %v1477
    %v1479 = vsub.s32 %v1478, 2
    %vm1480 = vcmp.gt.s32.totalorder 0, %v1479
    %v1481 = vsel %vm1480, 0, %v1479
    %v1482 = vsub.s32 32, %v1481
    %v1483 = vshll.u32 %v1474, %v1481
    %v1484 = vshrl.u32 %v1466, %v1482
    %v1485 = vor.u32 %v1483, %v1484
    %v1486 = vsub.s32 4294967266, %v1481
    %v1487 = vadd.s32 %v1486, 127
    %v1488 = vshll.u32 %v1487, 23
    %v1489 = vor.u32 4788187, %v1488
    %v1490 = vand.u32 2147483647, %v1489
    %v1492 = vcvt.s32.f32 %v1485
    %v1493 = vmul.f32 %v1492, %v1490
    %v1494 = vxor.u32 %v1493, 2147483648
    %v1495 = vsel %vm1412, %v1494, %v1493
    %v1496 = vsub.s32 4, %v1472
    %v1497 = vsel %vm1412, %v1496, %v1472
    %v1498 = vsel %vm1411, %v680, %v1495
    %v1499 = vsel %vm1411, 0, %v1497
    %v1500 = vcosq.f32.pop %v1498
    %v1501 = vsinq.f32.pop %v1498
    %vm1502 = vweird.f32 %v680
    %v1503 = vand.u32 %v1499, 3
    %vm1504 = vcmp.lt.s32.totalorder %v1503, 2
    %vm1505 = vcmp.eq.s32.totalorder %v1503, 0
    %v1506 = vxor.u32 %v1501, 2147483648
    %v1507 = vsel %vm1505, %v1500, %v1506
    %vm1508 = vcmp.eq.s32.totalorder %v1503, 2
    %v1509 = vxor.u32 %v1500, 2147483648
    %v1510 = vsel %vm1508, %v1509, %v1501
    %v1511 = vsel %vm1504, %v1507, %v1510
    %v1512 = vsel %vm1502, nan, %v1511
    %v1513 = vand.u32 2147483647, %v681
    %vm1514 = vcmp.le.f32.partialorder %v1513, 0.7853982
    %vm1515 = vcmp.lt.s32.totalorder %v681, 0
    %v1516 = vand.u32 %v681, 2139095040
    %v1517 = vshrl.u32 %v1516, 23
    %v1518 = vsub.s32 %v1517, 127
    %v1519 = vand.u32 2147483647, %v681
    %v1520 = vand.u32 %v1519, 8388607
    %v1521 = vor.u32 %v1520, 8388608
    %v1522 = vsub.s32 0, %v1521
    %v1523 = vadd.s32 %v1518, 1
    %vm1524 = vcmp.gt.s32.totalorder %v1523, 0
    %v1525 = vsel %vm1524, %v1523, 0
    %v1526 = vshrl.u32 %v1525, 5
    %v1527 = vand.u32 %v1525, 31
    %v1528 = vsub.s32 32, %v1527
    %v1529 = vshrl.u32 683565275, %v1528
    %v1530 = vshll.u32 683565275, %v1527
    %v1531 = vshrl.u32 2475754826, %v1528
    %v1532 = vor.u32 %v1530, %v1531
    %v1533 = vshll.u32 2475754826, %v1527
    %v1534 = vshrl.u32 2131351028, %v1528
    %v1535 = vor.u32 %v1533, %v1534
    %v1536 = vshll.u32 2131351028, %v1527
    %v1537 = vshrl.u32 2102212464, %v1528
    %v1538 = vor.u32 %v1536, %v1537
    %v1539 = vshll.u32 2102212464, %v1527
    %v1540 = vshrl.u32 920167782, %v1528
    %v1541 = vor.u32 %v1539, %v1540
    %v1542 = vshll.u32 920167782, %v1527
    %v1543 = vshrl.u32 1326507024, %v1528
    %v1544 = vor.u32 %v1542, %v1543
    %vm1545 = vcmp.lt.s32.totalorder %v1526, 1
    %vm1546 = vcmp.lt.s32.totalorder %v1526, 2
    %vm1547 = vcmp.lt.s32.totalorder %v1526, 3
    %vm1548 = vcmp.lt.s32.totalorder %v1526, 4
    %v1549 = vsel %vm1545, %v1529, %v1532
    %v1550 = vsel %vm1548, %v1538, 2102212464
    %v1551 = vsel %vm1547, %v1535, %v1550
    %v1552 = vsel %vm1546, %v1549, %v1551
    %v1553 = vsel %vm1545, %v1532, %v1535
    %v1554 = vsel %vm1548, %v1541, 920167782
    %v1555 = vsel %vm1547, %v1538, %v1554
    %v1556 = vsel %vm1546, %v1553, %v1555
    %v1557 = vsel %vm1545, %v1535, %v1538
    %v1558 = vsel %vm1548, %v1544, 1326507024
    %v1559 = vsel %vm1547, %v1541, %v1558
    %v1560 = vsel %vm1546, %v1557, %v1559
    %v1561 = vshll.u32 %v1521, 8
    %v1562 = vmul.u32.u64.compose %v1561, %v1560
    %v1563 = vextract.low.u32 %v1562
    %v1564 = vextract.high.u32 %v1562
    %v1565 = vmul.u32.u64.compose %v1561, %v1556
    %v1566 = vextract.low.u32 %v1565
    %v1567 = vextract.high.u32 %v1565
    %v1568 = vmul.u32 %v1561, %v1552
    %v1569 = vadd.s32 %v1564, %v1566
    %vm1570 = vc.u32 %v1564, %v1566
    %v1571 = vadd.s32 %v1567, 1
    %v1572 = vsel %vm1570, %v1571, %v1567
    %v1573 = vadd.s32 %v1568, %v1572
    %v1574 = vadd.s32 %v1573, 536870912
    %v1575 = vshrl.u32 %v1574, 30
    %v1576 = vshll.u32 %v1575, 30
    %v1577 = vsub.s32 %v1573, %v1576
    %vm1578 = vcmp.lt.s32.totalorder %v1577, 0
    %v1579 = vsub.s32 0, %v1577
    %v1580 = vsel %vm1578, %v1579, %v1577
    %v1581 = vclz %v1580
    %v1582 = vsub.s32 %v1581, 2
    %vm1583 = vcmp.gt.s32.totalorder 0, %v1582
    %v1584 = vsel %vm1583, 0, %v1582
    %v1585 = vsub.s32 32, %v1584
    %v1586 = vshll.u32 %v1577, %v1584
    %v1587 = vshrl.u32 %v1569, %v1585
    %v1588 = vor.u32 %v1586, %v1587
    %v1589 = vsub.s32 4294967266, %v1584
    %v1590 = vadd.s32 %v1589, 127
    %v1591 = vshll.u32 %v1590, 23
    %v1592 = vor.u32 4788187, %v1591
    %v1593 = vand.u32 2147483647, %v1592
    %v1595 = vcvt.s32.f32 %v1588
    %v1596 = vmul.f32 %v1595, %v1593
    %v1597 = vxor.u32 %v1596, 2147483648
    %v1598 = vsel %vm1515, %v1597, %v1596
    %v1599 = vsub.s32 4, %v1575
    %v1600 = vsel %vm1515, %v1599, %v1575
    %v1601 = vsel %vm1514, %v681, %v1598
    %v1602 = vsel %vm1514, 0, %v1600
    %v1603 = vcosq.f32.pop %v1601
    %v1604 = vsinq.f32.pop %v1601
    %vm1605 = vweird.f32 %v681
    %v1606 = vand.u32 %v1602, 3
    %vm1607 = vcmp.lt.s32.totalorder %v1606, 2
    %vm1608 = vcmp.eq.s32.totalorder %v1606, 0
    %v1609 = vxor.u32 %v1604, 2147483648
    %v1610 = vsel %vm1608, %v1603, %v1609
    %vm1611 = vcmp.eq.s32.totalorder %v1606, 2
    %v1612 = vxor.u32 %v1603, 2147483648
    %v1613 = vsel %vm1611, %v1612, %v1604
    %v1614 = vsel %vm1607, %v1610, %v1613
    %v1615 = vsel %vm1605, nan, %v1614
    %v1616 = vand.u32 2147483647, %v682
    %vm1617 = vcmp.le.f32.partialorder %v1616, 0.7853982
    %vm1618 = vcmp.lt.s32.totalorder %v682, 0
    %v1619 = vand.u32 %v682, 2139095040
    %v1620 = vshrl.u32 %v1619, 23
    %v1621 = vsub.s32 %v1620, 127
    %v1622 = vand.u32 2147483647, %v682
    %v1623 = vand.u32 %v1622, 8388607
    %v1624 = vor.u32 %v1623, 8388608
    %v1625 = vsub.s32 0, %v1624
    %v1626 = vadd.s32 %v1621, 1
    %vm1627 = vcmp.gt.s32.totalorder %v1626, 0
    %v1628 = vsel %vm1627, %v1626, 0
    %v1629 = vshrl.u32 %v1628, 5
    %v1630 = vand.u32 %v1628, 31
    %v1631 = vsub.s32 32, %v1630
    %v1632 = vshrl.u32 683565275, %v1631
    %v1633 = vshll.u32 683565275, %v1630
    %v1634 = vshrl.u32 2475754826, %v1631
    %v1635 = vor.u32 %v1633, %v1634
    %v1636 = vshll.u32 2475754826, %v1630
    %v1637 = vshrl.u32 2131351028, %v1631
    %v1638 = vor.u32 %v1636, %v1637
    %v1639 = vshll.u32 2131351028, %v1630
    %v1640 = vshrl.u32 2102212464, %v1631
    %v1641 = vor.u32 %v1639, %v1640
    %v1642 = vshll.u32 2102212464, %v1630
    %v1643 = vshrl.u32 920167782, %v1631
    %v1644 = vor.u32 %v1642, %v1643
    %v1645 = vshll.u32 920167782, %v1630
    %v1646 = vshrl.u32 1326507024, %v1631
    %v1647 = vor.u32 %v1645, %v1646
    %vm1648 = vcmp.lt.s32.totalorder %v1629, 1
    %vm1649 = vcmp.lt.s32.totalorder %v1629, 2
    %vm1650 = vcmp.lt.s32.totalorder %v1629, 3
    %vm1651 = vcmp.lt.s32.totalorder %v1629, 4
    %v1652 = vsel %vm1648, %v1632, %v1635
    %v1653 = vsel %vm1651, %v1641, 2102212464
    %v1654 = vsel %vm1650, %v1638, %v1653
    %v1655 = vsel %vm1649, %v1652, %v1654
    %v1656 = vsel %vm1648, %v1635, %v1638
    %v1657 = vsel %vm1651, %v1644, 920167782
    %v1658 = vsel %vm1650, %v1641, %v1657
    %v1659 = vsel %vm1649, %v1656, %v1658
    %v1660 = vsel %vm1648, %v1638, %v1641
    %v1661 = vsel %vm1651, %v1647, 1326507024
    %v1662 = vsel %vm1650, %v1644, %v1661
    %v1663 = vsel %vm1649, %v1660, %v1662
    %v1664 = vshll.u32 %v1624, 8
    %v1665 = vmul.u32.u64.compose %v1664, %v1663
    %v1666 = vextract.low.u32 %v1665
    %v1667 = vextract.high.u32 %v1665
    %v1668 = vmul.u32.u64.compose %v1664, %v1659
    %v1669 = vextract.low.u32 %v1668
    %v1670 = vextract.high.u32 %v1668
    %v1671 = vmul.u32 %v1664, %v1655
    %v1672 = vadd.s32 %v1667, %v1669
    %vm1673 = vc.u32 %v1667, %v1669
    %v1674 = vadd.s32 %v1670, 1
    %v1675 = vsel %vm1673, %v1674, %v1670
    %v1676 = vadd.s32 %v1671, %v1675
    %v1677 = vadd.s32 %v1676, 536870912
    %v1678 = vshrl.u32 %v1677, 30
    %v1679 = vshll.u32 %v1678, 30
    %v1680 = vsub.s32 %v1676, %v1679
    %vm1681 = vcmp.lt.s32.totalorder %v1680, 0
    %v1682 = vsub.s32 0, %v1680
    %v1683 = vsel %vm1681, %v1682, %v1680
    %v1684 = vclz %v1683
    %v1685 = vsub.s32 %v1684, 2
    %vm1686 = vcmp.gt.s32.totalorder 0, %v1685
    %v1687 = vsel %vm1686, 0, %v1685
    %v1688 = vsub.s32 32, %v1687
    %v1689 = vshll.u32 %v1680, %v1687
    %v1690 = vshrl.u32 %v1672, %v1688
    %v1691 = vor.u32 %v1689, %v1690
    %v1692 = vsub.s32 4294967266, %v1687
    %v1693 = vadd.s32 %v1692, 127
    %v1694 = vshll.u32 %v1693, 23
    %v1695 = vor.u32 4788187, %v1694
    %v1696 = vand.u32 2147483647, %v1695
    %v1698 = vcvt.s32.f32 %v1691
    %v1699 = vmul.f32 %v1698, %v1696
    %v1700 = vxor.u32 %v1699, 2147483648
    %v1701 = vsel %vm1618, %v1700, %v1699
    %v1702 = vsub.s32 4, %v1678
    %v1703 = vsel %vm1618, %v1702, %v1678
    %v1704 = vsel %vm1617, %v682, %v1701
    %v1705 = vsel %vm1617, 0, %v1703
    %v1706 = vcosq.f32.pop %v1704
    %v1707 = vsinq.f32.pop %v1704
    %vm1708 = vweird.f32 %v682
    %v1709 = vand.u32 %v1705, 3
    %vm1710 = vcmp.lt.s32.totalorder %v1709, 2
    %vm1711 = vcmp.eq.s32.totalorder %v1709, 0
    %v1712 = vxor.u32 %v1707, 2147483648
    %v1713 = vsel %vm1711, %v1706, %v1712
    %vm1714 = vcmp.eq.s32.totalorder %v1709, 2
    %v1715 = vxor.u32 %v1706, 2147483648
    %v1716 = vsel %vm1714, %v1715, %v1707
    %v1717 = vsel %vm1710, %v1713, %v1716
    %v1718 = vsel %vm1708, nan, %v1717
    %v1719 = vand.u32 2147483647, %v683
    %vm1720 = vcmp.le.f32.partialorder %v1719, 0.7853982
    %vm1721 = vcmp.lt.s32.totalorder %v683, 0
    %v1722 = vand.u32 %v683, 2139095040
    %v1723 = vshrl.u32 %v1722, 23
    %v1724 = vsub.s32 %v1723, 127
    %v1725 = vand.u32 2147483647, %v683
    %v1726 = vand.u32 %v1725, 8388607
    %v1727 = vor.u32 %v1726, 8388608
    %v1728 = vsub.s32 0, %v1727
    %v1729 = vadd.s32 %v1724, 1
    %vm1730 = vcmp.gt.s32.totalorder %v1729, 0
    %v1731 = vsel %vm1730, %v1729, 0
    %v1732 = vshrl.u32 %v1731, 5
    %v1733 = vand.u32 %v1731, 31
    %v1734 = vsub.s32 32, %v1733
    %v1735 = vshrl.u32 683565275, %v1734
    %v1736 = vshll.u32 683565275, %v1733
    %v1737 = vshrl.u32 2475754826, %v1734
    %v1738 = vor.u32 %v1736, %v1737
    %v1739 = vshll.u32 2475754826, %v1733
    %v1740 = vshrl.u32 2131351028, %v1734
    %v1741 = vor.u32 %v1739, %v1740
    %v1742 = vshll.u32 2131351028, %v1733
    %v1743 = vshrl.u32 2102212464, %v1734
    %v1744 = vor.u32 %v1742, %v1743
    %v1745 = vshll.u32 2102212464, %v1733
    %v1746 = vshrl.u32 920167782, %v1734
    %v1747 = vor.u32 %v1745, %v1746
    %v1748 = vshll.u32 920167782, %v1733
    %v1749 = vshrl.u32 1326507024, %v1734
    %v1750 = vor.u32 %v1748, %v1749
    %vm1751 = vcmp.lt.s32.totalorder %v1732, 1
    %vm1752 = vcmp.lt.s32.totalorder %v1732, 2
    %vm1753 = vcmp.lt.s32.totalorder %v1732, 3
    %vm1754 = vcmp.lt.s32.totalorder %v1732, 4
    %v1755 = vsel %vm1751, %v1735, %v1738
    %v1756 = vsel %vm1754, %v1744, 2102212464
    %v1757 = vsel %vm1753, %v1741, %v1756
    %v1758 = vsel %vm1752, %v1755, %v1757
    %v1759 = vsel %vm1751, %v1738, %v1741
    %v1760 = vsel %vm1754, %v1747, 920167782
    %v1761 = vsel %vm1753, %v1744, %v1760
    %v1762 = vsel %vm1752, %v1759, %v1761
    %v1763 = vsel %vm1751, %v1741, %v1744
    %v1764 = vsel %vm1754, %v1750, 1326507024
    %v1765 = vsel %vm1753, %v1747, %v1764
    %v1766 = vsel %vm1752, %v1763, %v1765
    %v1767 = vshll.u32 %v1727, 8
    %v1768 = vmul.u32.u64.compose %v1767, %v1766
    %v1769 = vextract.low.u32 %v1768
    %v1770 = vextract.high.u32 %v1768
    %v1771 = vmul.u32.u64.compose %v1767, %v1762
    %v1772 = vextract.low.u32 %v1771
    %v1773 = vextract.high.u32 %v1771
    %v1774 = vmul.u32 %v1767, %v1758
    %v1775 = vadd.s32 %v1770, %v1772
    %vm1776 = vc.u32 %v1770, %v1772
    %v1777 = vadd.s32 %v1773, 1
    %v1778 = vsel %vm1776, %v1777, %v1773
    %v1779 = vadd.s32 %v1774, %v1778
    %v1780 = vadd.s32 %v1779, 536870912
    %v1781 = vshrl.u32 %v1780, 30
    %v1782 = vshll.u32 %v1781, 30
    %v1783 = vsub.s32 %v1779, %v1782
    %vm1784 = vcmp.lt.s32.totalorder %v1783, 0
    %v1785 = vsub.s32 0, %v1783
    %v1786 = vsel %vm1784, %v1785, %v1783
    %v1787 = vclz %v1786
    %v1788 = vsub.s32 %v1787, 2
    %vm1789 = vcmp.gt.s32.totalorder 0, %v1788
    %v1790 = vsel %vm1789, 0, %v1788
    %v1791 = vsub.s32 32, %v1790
    %v1792 = vshll.u32 %v1783, %v1790
    %v1793 = vshrl.u32 %v1775, %v1791
    %v1794 = vor.u32 %v1792, %v1793
    %v1795 = vsub.s32 4294967266, %v1790
    %v1796 = vadd.s32 %v1795, 127
    %v1797 = vshll.u32 %v1796, 23
    %v1798 = vor.u32 4788187, %v1797
    %v1799 = vand.u32 2147483647, %v1798
    %v1801 = vcvt.s32.f32 %v1794
    %v1802 = vmul.f32 %v1801, %v1799
    %v1803 = vxor.u32 %v1802, 2147483648
    %v1804 = vsel %vm1721, %v1803, %v1802
    %v1805 = vsub.s32 4, %v1781
    %v1806 = vsel %vm1721, %v1805, %v1781
    %v1807 = vsel %vm1720, %v683, %v1804
    %v1808 = vsel %vm1720, 0, %v1806
    %v1809 = vcosq.f32.pop %v1807
    %v1810 = vsinq.f32.pop %v1807
    %vm1811 = vweird.f32 %v683
    %v1812 = vand.u32 %v1808, 3
    %vm1813 = vcmp.lt.s32.totalorder %v1812, 2
    %vm1814 = vcmp.eq.s32.totalorder %v1812, 0
    %v1815 = vxor.u32 %v1810, 2147483648
    %v1816 = vsel %vm1814, %v1809, %v1815
    %vm1817 = vcmp.eq.s32.totalorder %v1812, 2
    %v1818 = vxor.u32 %v1809, 2147483648
    %v1819 = vsel %vm1817, %v1818, %v1810
    %v1820 = vsel %vm1813, %v1816, %v1819
    %v1821 = vsel %vm1811, nan, %v1820
    %v1822 = vand.u32 2147483647, %v684
    %vm1823 = vcmp.le.f32.partialorder %v1822, 0.7853982
    %vm1824 = vcmp.lt.s32.totalorder %v684, 0
    %v1825 = vand.u32 %v684, 2139095040
    %v1826 = vshrl.u32 %v1825, 23
    %v1827 = vsub.s32 %v1826, 127
    %v1828 = vand.u32 2147483647, %v684
    %v1829 = vand.u32 %v1828, 8388607
    %v1830 = vor.u32 %v1829, 8388608
    %v1831 = vsub.s32 0, %v1830
    %v1832 = vadd.s32 %v1827, 1
    %vm1833 = vcmp.gt.s32.totalorder %v1832, 0
    %v1834 = vsel %vm1833, %v1832, 0
    %v1835 = vshrl.u32 %v1834, 5
    %v1836 = vand.u32 %v1834, 31
    %v1837 = vsub.s32 32, %v1836
    %v1838 = vshrl.u32 683565275, %v1837
    %v1839 = vshll.u32 683565275, %v1836
    %v1840 = vshrl.u32 2475754826, %v1837
    %v1841 = vor.u32 %v1839, %v1840
    %v1842 = vshll.u32 2475754826, %v1836
    %v1843 = vshrl.u32 2131351028, %v1837
    %v1844 = vor.u32 %v1842, %v1843
    %v1845 = vshll.u32 2131351028, %v1836
    %v1846 = vshrl.u32 2102212464, %v1837
    %v1847 = vor.u32 %v1845, %v1846
    %v1848 = vshll.u32 2102212464, %v1836
    %v1849 = vshrl.u32 920167782, %v1837
    %v1850 = vor.u32 %v1848, %v1849
    %v1851 = vshll.u32 920167782, %v1836
    %v1852 = vshrl.u32 1326507024, %v1837
    %v1853 = vor.u32 %v1851, %v1852
    %vm1854 = vcmp.lt.s32.totalorder %v1835, 1
    %vm1855 = vcmp.lt.s32.totalorder %v1835, 2
    %vm1856 = vcmp.lt.s32.totalorder %v1835, 3
    %vm1857 = vcmp.lt.s32.totalorder %v1835, 4
    %v1858 = vsel %vm1854, %v1838, %v1841
    %v1859 = vsel %vm1857, %v1847, 2102212464
    %v1860 = vsel %vm1856, %v1844, %v1859
    %v1861 = vsel %vm1855, %v1858, %v1860
    %v1862 = vsel %vm1854, %v1841, %v1844
    %v1863 = vsel %vm1857, %v1850, 920167782
    %v1864 = vsel %vm1856, %v1847, %v1863
    %v1865 = vsel %vm1855, %v1862, %v1864
    %v1866 = vsel %vm1854, %v1844, %v1847
    %v1867 = vsel %vm1857, %v1853, 1326507024
    %v1868 = vsel %vm1856, %v1850, %v1867
    %v1869 = vsel %vm1855, %v1866, %v1868
    %v1870 = vshll.u32 %v1830, 8
    %v1871 = vmul.u32.u64.compose %v1870, %v1869
    %v1872 = vextract.low.u32 %v1871
    %v1873 = vextract.high.u32 %v1871
    %v1874 = vmul.u32.u64.compose %v1870, %v1865
    %v1875 = vextract.low.u32 %v1874
    %v1876 = vextract.high.u32 %v1874
    %v1877 = vmul.u32 %v1870, %v1861
    %v1878 = vadd.s32 %v1873, %v1875
    %vm1879 = vc.u32 %v1873, %v1875
    %v1880 = vadd.s32 %v1876, 1
    %v1881 = vsel %vm1879, %v1880, %v1876
    %v1882 = vadd.s32 %v1877, %v1881
    %v1883 = vadd.s32 %v1882, 536870912
    %v1884 = vshrl.u32 %v1883, 30
    %v1885 = vshll.u32 %v1884, 30
    %v1886 = vsub.s32 %v1882, %v1885
    %vm1887 = vcmp.lt.s32.totalorder %v1886, 0
    %v1888 = vsub.s32 0, %v1886
    %v1889 = vsel %vm1887, %v1888, %v1886
    %v1890 = vclz %v1889
    %v1891 = vsub.s32 %v1890, 2
    %vm1892 = vcmp.gt.s32.totalorder 0, %v1891
    %v1893 = vsel %vm1892, 0, %v1891
    %v1894 = vsub.s32 32, %v1893
    %v1895 = vshll.u32 %v1886, %v1893
    %v1896 = vshrl.u32 %v1878, %v1894
    %v1897 = vor.u32 %v1895, %v1896
    %v1898 = vsub.s32 4294967266, %v1893
    %v1899 = vadd.s32 %v1898, 127
    %v1900 = vshll.u32 %v1899, 23
    %v1901 = vor.u32 4788187, %v1900
    %v1902 = vand.u32 2147483647, %v1901
    %v1904 = vcvt.s32.f32 %v1897
    %v1905 = vmul.f32 %v1904, %v1902
    %v1906 = vxor.u32 %v1905, 2147483648
    %v1907 = vsel %vm1824, %v1906, %v1905
    %v1908 = vsub.s32 4, %v1884
    %v1909 = vsel %vm1824, %v1908, %v1884
    %v1910 = vsel %vm1823, %v684, %v1907
    %v1911 = vsel %vm1823, 0, %v1909
    %v1912 = vcosq.f32.pop %v1910
    %v1913 = vsinq.f32.pop %v1910
    %vm1914 = vweird.f32 %v684
    %v1915 = vand.u32 %v1911, 3
    %vm1916 = vcmp.lt.s32.totalorder %v1915, 2
    %vm1917 = vcmp.eq.s32.totalorder %v1915, 0
    %v1918 = vxor.u32 %v1913, 2147483648
    %v1919 = vsel %vm1917, %v1912, %v1918
    %vm1920 = vcmp.eq.s32.totalorder %v1915, 2
    %v1921 = vxor.u32 %v1912, 2147483648
    %v1922 = vsel %vm1920, %v1921, %v1913
    %v1923 = vsel %vm1916, %v1919, %v1922
    %v1924 = vsel %vm1914, nan, %v1923
    %v1925 = vand.u32 2147483647, %v685
    %vm1926 = vcmp.le.f32.partialorder %v1925, 0.7853982
    %vm1927 = vcmp.lt.s32.totalorder %v685, 0
    %v1928 = vand.u32 %v685, 2139095040
    %v1929 = vshrl.u32 %v1928, 23
    %v1930 = vsub.s32 %v1929, 127
    %v1931 = vand.u32 2147483647, %v685
    %v1932 = vand.u32 %v1931, 8388607
    %v1933 = vor.u32 %v1932, 8388608
    %v1934 = vsub.s32 0, %v1933
    %v1935 = vadd.s32 %v1930, 1
    %vm1936 = vcmp.gt.s32.totalorder %v1935, 0
    %v1937 = vsel %vm1936, %v1935, 0
    %v1938 = vshrl.u32 %v1937, 5
    %v1939 = vand.u32 %v1937, 31
    %v1940 = vsub.s32 32, %v1939
    %v1941 = vshrl.u32 683565275, %v1940
    %v1942 = vshll.u32 683565275, %v1939
    %v1943 = vshrl.u32 2475754826, %v1940
    %v1944 = vor.u32 %v1942, %v1943
    %v1945 = vshll.u32 2475754826, %v1939
    %v1946 = vshrl.u32 2131351028, %v1940
    %v1947 = vor.u32 %v1945, %v1946
    %v1948 = vshll.u32 2131351028, %v1939
    %v1949 = vshrl.u32 2102212464, %v1940
    %v1950 = vor.u32 %v1948, %v1949
    %v1951 = vshll.u32 2102212464, %v1939
    %v1952 = vshrl.u32 920167782, %v1940
    %v1953 = vor.u32 %v1951, %v1952
    %v1954 = vshll.u32 920167782, %v1939
    %v1955 = vshrl.u32 1326507024, %v1940
    %v1956 = vor.u32 %v1954, %v1955
    %vm1957 = vcmp.lt.s32.totalorder %v1938, 1
    %vm1958 = vcmp.lt.s32.totalorder %v1938, 2
    %vm1959 = vcmp.lt.s32.totalorder %v1938, 3
    %vm1960 = vcmp.lt.s32.totalorder %v1938, 4
    %v1961 = vsel %vm1957, %v1941, %v1944
    %v1962 = vsel %vm1960, %v1950, 2102212464
    %v1963 = vsel %vm1959, %v1947, %v1962
    %v1964 = vsel %vm1958, %v1961, %v1963
    %v1965 = vsel %vm1957, %v1944, %v1947
    %v1966 = vsel %vm1960, %v1953, 920167782
    %v1967 = vsel %vm1959, %v1950, %v1966
    %v1968 = vsel %vm1958, %v1965, %v1967
    %v1969 = vsel %vm1957, %v1947, %v1950
    %v1970 = vsel %vm1960, %v1956, 1326507024
    %v1971 = vsel %vm1959, %v1953, %v1970
    %v1972 = vsel %vm1958, %v1969, %v1971
    %v1973 = vshll.u32 %v1933, 8
    %v1974 = vmul.u32.u64.compose %v1973, %v1972
    %v1975 = vextract.low.u32 %v1974
    %v1976 = vextract.high.u32 %v1974
    %v1977 = vmul.u32.u64.compose %v1973, %v1968
    %v1978 = vextract.low.u32 %v1977
    %v1979 = vextract.high.u32 %v1977
    %v1980 = vmul.u32 %v1973, %v1964
    %v1981 = vadd.s32 %v1976, %v1978
    %vm1982 = vc.u32 %v1976, %v1978
    %v1983 = vadd.s32 %v1979, 1
    %v1984 = vsel %vm1982, %v1983, %v1979
    %v1985 = vadd.s32 %v1980, %v1984
    %v1986 = vadd.s32 %v1985, 536870912
    %v1987 = vshrl.u32 %v1986, 30
    %v1988 = vshll.u32 %v1987, 30
    %v1989 = vsub.s32 %v1985, %v1988
    %vm1990 = vcmp.lt.s32.totalorder %v1989, 0
    %v1991 = vsub.s32 0, %v1989
    %v1992 = vsel %vm1990, %v1991, %v1989
    %v1993 = vclz %v1992
    %v1994 = vsub.s32 %v1993, 2
    %vm1995 = vcmp.gt.s32.totalorder 0, %v1994
    %v1996 = vsel %vm1995, 0, %v1994
    %v1997 = vsub.s32 32, %v1996
    %v1998 = vshll.u32 %v1989, %v1996
    %v1999 = vshrl.u32 %v1981, %v1997
    %v2000 = vor.u32 %v1998, %v1999
    %v2001 = vsub.s32 4294967266, %v1996
    %v2002 = vadd.s32 %v2001, 127
    %v2003 = vshll.u32 %v2002, 23
    %v2004 = vor.u32 4788187, %v2003
    %v2005 = vand.u32 2147483647, %v2004
    %v2007 = vcvt.s32.f32 %v2000
    %v2008 = vmul.f32 %v2007, %v2005
    %v2009 = vxor.u32 %v2008, 2147483648
    %v2010 = vsel %vm1927, %v2009, %v2008
    %v2011 = vsub.s32 4, %v1987
    %v2012 = vsel %vm1927, %v2011, %v1987
    %v2013 = vsel %vm1926, %v685, %v2010
    %v2014 = vsel %vm1926, 0, %v2012
    %v2015 = vcosq.f32.pop %v2013
    %v2016 = vsinq.f32.pop %v2013
    %vm2017 = vweird.f32 %v685
    %v2018 = vand.u32 %v2014, 3
    %vm2019 = vcmp.lt.s32.totalorder %v2018, 2
    %vm2020 = vcmp.eq.s32.totalorder %v2018, 0
    %v2021 = vxor.u32 %v2016, 2147483648
    %v2022 = vsel %vm2020, %v2015, %v2021
    %vm2023 = vcmp.eq.s32.totalorder %v2018, 2
    %v2024 = vxor.u32 %v2015, 2147483648
    %v2025 = vsel %vm2023, %v2024, %v2016
    %v2026 = vsel %vm2019, %v2022, %v2025
    %v2027 = vsel %vm2017, nan, %v2026
    %v2028 = vand.u32 2147483647, %v686
    %vm2029 = vcmp.le.f32.partialorder %v2028, 0.7853982
    %vm2030 = vcmp.lt.s32.totalorder %v686, 0
    %v2031 = vand.u32 %v686, 2139095040
    %v2032 = vshrl.u32 %v2031, 23
    %v2033 = vsub.s32 %v2032, 127
    %v2034 = vand.u32 2147483647, %v686
    %v2035 = vand.u32 %v2034, 8388607
    %v2036 = vor.u32 %v2035, 8388608
    %v2037 = vsub.s32 0, %v2036
    %v2038 = vadd.s32 %v2033, 1
    %vm2039 = vcmp.gt.s32.totalorder %v2038, 0
    %v2040 = vsel %vm2039, %v2038, 0
    %v2041 = vshrl.u32 %v2040, 5
    %v2042 = vand.u32 %v2040, 31
    %v2043 = vsub.s32 32, %v2042
    %v2044 = vshrl.u32 683565275, %v2043
    %v2045 = vshll.u32 683565275, %v2042
    %v2046 = vshrl.u32 2475754826, %v2043
    %v2047 = vor.u32 %v2045, %v2046
    %v2048 = vshll.u32 2475754826, %v2042
    %v2049 = vshrl.u32 2131351028, %v2043
    %v2050 = vor.u32 %v2048, %v2049
    %v2051 = vshll.u32 2131351028, %v2042
    %v2052 = vshrl.u32 2102212464, %v2043
    %v2053 = vor.u32 %v2051, %v2052
    %v2054 = vshll.u32 2102212464, %v2042
    %v2055 = vshrl.u32 920167782, %v2043
    %v2056 = vor.u32 %v2054, %v2055
    %v2057 = vshll.u32 920167782, %v2042
    %v2058 = vshrl.u32 1326507024, %v2043
    %v2059 = vor.u32 %v2057, %v2058
    %vm2060 = vcmp.lt.s32.totalorder %v2041, 1
    %vm2061 = vcmp.lt.s32.totalorder %v2041, 2
    %vm2062 = vcmp.lt.s32.totalorder %v2041, 3
    %vm2063 = vcmp.lt.s32.totalorder %v2041, 4
    %v2064 = vsel %vm2060, %v2044, %v2047
    %v2065 = vsel %vm2063, %v2053, 2102212464
    %v2066 = vsel %vm2062, %v2050, %v2065
    %v2067 = vsel %vm2061, %v2064, %v2066
    %v2068 = vsel %vm2060, %v2047, %v2050
    %v2069 = vsel %vm2063, %v2056, 920167782
    %v2070 = vsel %vm2062, %v2053, %v2069
    %v2071 = vsel %vm2061, %v2068, %v2070
    %v2072 = vsel %vm2060, %v2050, %v2053
    %v2073 = vsel %vm2063, %v2059, 1326507024
    %v2074 = vsel %vm2062, %v2056, %v2073
    %v2075 = vsel %vm2061, %v2072, %v2074
    %v2076 = vshll.u32 %v2036, 8
    %v2077 = vmul.u32.u64.compose %v2076, %v2075
    %v2078 = vextract.low.u32 %v2077
    %v2079 = vextract.high.u32 %v2077
    %v2080 = vmul.u32.u64.compose %v2076, %v2071
    %v2081 = vextract.low.u32 %v2080
    %v2082 = vextract.high.u32 %v2080
    %v2083 = vmul.u32 %v2076, %v2067
    %v2084 = vadd.s32 %v2079, %v2081
    %vm2085 = vc.u32 %v2079, %v2081
    %v2086 = vadd.s32 %v2082, 1
    %v2087 = vsel %vm2085, %v2086, %v2082
    %v2088 = vadd.s32 %v2083, %v2087
    %v2089 = vadd.s32 %v2088, 536870912
    %v2090 = vshrl.u32 %v2089, 30
    %v2091 = vshll.u32 %v2090, 30
    %v2092 = vsub.s32 %v2088, %v2091
    %vm2093 = vcmp.lt.s32.totalorder %v2092, 0
    %v2094 = vsub.s32 0, %v2092
    %v2095 = vsel %vm2093, %v2094, %v2092
    %v2096 = vclz %v2095
    %v2097 = vsub.s32 %v2096, 2
    %vm2098 = vcmp.gt.s32.totalorder 0, %v2097
    %v2099 = vsel %vm2098, 0, %v2097
    %v2100 = vsub.s32 32, %v2099
    %v2101 = vshll.u32 %v2092, %v2099
    %v2102 = vshrl.u32 %v2084, %v2100
    %v2103 = vor.u32 %v2101, %v2102
    %v2104 = vsub.s32 4294967266, %v2099
    %v2105 = vadd.s32 %v2104, 127
    %v2106 = vshll.u32 %v2105, 23
    %v2107 = vor.u32 4788187, %v2106
    %v2108 = vand.u32 2147483647, %v2107
    %v2110 = vcvt.s32.f32 %v2103
    %v2111 = vmul.f32 %v2110, %v2108
    %v2112 = vxor.u32 %v2111, 2147483648
    %v2113 = vsel %vm2030, %v2112, %v2111
    %v2114 = vsub.s32 4, %v2090
    %v2115 = vsel %vm2030, %v2114, %v2090
    %v2116 = vsel %vm2029, %v686, %v2113
    %v2117 = vsel %vm2029, 0, %v2115
    %v2118 = vcosq.f32.pop %v2116
    %v2119 = vsinq.f32.pop %v2116
    %vm2120 = vweird.f32 %v686
    %v2121 = vand.u32 %v2117, 3
    %vm2122 = vcmp.lt.s32.totalorder %v2121, 2
    %vm2123 = vcmp.eq.s32.totalorder %v2121, 0
    %v2124 = vxor.u32 %v2119, 2147483648
    %v2125 = vsel %vm2123, %v2118, %v2124
    %vm2126 = vcmp.eq.s32.totalorder %v2121, 2
    %v2127 = vxor.u32 %v2118, 2147483648
    %v2128 = vsel %vm2126, %v2127, %v2119
    %v2129 = vsel %vm2122, %v2125, %v2128
    %v2130 = vsel %vm2120, nan, %v2129
    %v2131 = vand.u32 2147483647, %v687
    %vm2132 = vcmp.le.f32.partialorder %v2131, 0.7853982
    %vm2133 = vcmp.lt.s32.totalorder %v687, 0
    %v2134 = vand.u32 %v687, 2139095040
    %v2135 = vshrl.u32 %v2134, 23
    %v2136 = vsub.s32 %v2135, 127
    %v2137 = vand.u32 2147483647, %v687
    %v2138 = vand.u32 %v2137, 8388607
    %v2139 = vor.u32 %v2138, 8388608
    %v2140 = vsub.s32 0, %v2139
    %v2141 = vadd.s32 %v2136, 1
    %vm2142 = vcmp.gt.s32.totalorder %v2141, 0
    %v2143 = vsel %vm2142, %v2141, 0
    %v2144 = vshrl.u32 %v2143, 5
    %v2145 = vand.u32 %v2143, 31
    %v2146 = vsub.s32 32, %v2145
    %v2147 = vshrl.u32 683565275, %v2146
    %v2148 = vshll.u32 683565275, %v2145
    %v2149 = vshrl.u32 2475754826, %v2146
    %v2150 = vor.u32 %v2148, %v2149
    %v2151 = vshll.u32 2475754826, %v2145
    %v2152 = vshrl.u32 2131351028, %v2146
    %v2153 = vor.u32 %v2151, %v2152
    %v2154 = vshll.u32 2131351028, %v2145
    %v2155 = vshrl.u32 2102212464, %v2146
    %v2156 = vor.u32 %v2154, %v2155
    %v2157 = vshll.u32 2102212464, %v2145
    %v2158 = vshrl.u32 920167782, %v2146
    %v2159 = vor.u32 %v2157, %v2158
    %v2160 = vshll.u32 920167782, %v2145
    %v2161 = vshrl.u32 1326507024, %v2146
    %v2162 = vor.u32 %v2160, %v2161
    %vm2163 = vcmp.lt.s32.totalorder %v2144, 1
    %vm2164 = vcmp.lt.s32.totalorder %v2144, 2
    %vm2165 = vcmp.lt.s32.totalorder %v2144, 3
    %vm2166 = vcmp.lt.s32.totalorder %v2144, 4
    %v2167 = vsel %vm2163, %v2147, %v2150
    %v2168 = vsel %vm2166, %v2156, 2102212464
    %v2169 = vsel %vm2165, %v2153, %v2168
    %v2170 = vsel %vm2164, %v2167, %v2169
    %v2171 = vsel %vm2163, %v2150, %v2153
    %v2172 = vsel %vm2166, %v2159, 920167782
    %v2173 = vsel %vm2165, %v2156, %v2172
    %v2174 = vsel %vm2164, %v2171, %v2173
    %v2175 = vsel %vm2163, %v2153, %v2156
    %v2176 = vsel %vm2166, %v2162, 1326507024
    %v2177 = vsel %vm2165, %v2159, %v2176
    %v2178 = vsel %vm2164, %v2175, %v2177
    %v2179 = vshll.u32 %v2139, 8
    %v2180 = vmul.u32.u64.compose %v2179, %v2178
    %v2181 = vextract.low.u32 %v2180
    %v2182 = vextract.high.u32 %v2180
    %v2183 = vmul.u32.u64.compose %v2179, %v2174
    %v2184 = vextract.low.u32 %v2183
    %v2185 = vextract.high.u32 %v2183
    %v2186 = vmul.u32 %v2179, %v2170
    %v2187 = vadd.s32 %v2182, %v2184
    %vm2188 = vc.u32 %v2182, %v2184
    %v2189 = vadd.s32 %v2185, 1
    %v2190 = vsel %vm2188, %v2189, %v2185
    %v2191 = vadd.s32 %v2186, %v2190
    %v2192 = vadd.s32 %v2191, 536870912
    %v2193 = vshrl.u32 %v2192, 30
    %v2194 = vshll.u32 %v2193, 30
    %v2195 = vsub.s32 %v2191, %v2194
    %vm2196 = vcmp.lt.s32.totalorder %v2195, 0
    %v2197 = vsub.s32 0, %v2195
    %v2198 = vsel %vm2196, %v2197, %v2195
    %v2199 = vclz %v2198
    %v2200 = vsub.s32 %v2199, 2
    %vm2201 = vcmp.gt.s32.totalorder 0, %v2200
    %v2202 = vsel %vm2201, 0, %v2200
    %v2203 = vsub.s32 32, %v2202
    %v2204 = vshll.u32 %v2195, %v2202
    %v2205 = vshrl.u32 %v2187, %v2203
    %v2206 = vor.u32 %v2204, %v2205
    %v2207 = vsub.s32 4294967266, %v2202
    %v2208 = vadd.s32 %v2207, 127
    %v2209 = vshll.u32 %v2208, 23
    %v2210 = vor.u32 4788187, %v2209
    %v2211 = vand.u32 2147483647, %v2210
    %v2213 = vcvt.s32.f32 %v2206
    %v2214 = vmul.f32 %v2213, %v2211
    %v2215 = vxor.u32 %v2214, 2147483648
    %v2216 = vsel %vm2133, %v2215, %v2214
    %v2217 = vsub.s32 4, %v2193
    %v2218 = vsel %vm2133, %v2217, %v2193
    %v2219 = vsel %vm2132, %v687, %v2216
    %v2220 = vsel %vm2132, 0, %v2218
    %v2221 = vcosq.f32.pop %v2219
    %v2222 = vsinq.f32.pop %v2219
    %vm2223 = vweird.f32 %v687
    %v2224 = vand.u32 %v2220, 3
    %vm2225 = vcmp.lt.s32.totalorder %v2224, 2
    %vm2226 = vcmp.eq.s32.totalorder %v2224, 0
    %v2227 = vxor.u32 %v2222, 2147483648
    %v2228 = vsel %vm2226, %v2221, %v2227
    %vm2229 = vcmp.eq.s32.totalorder %v2224, 2
    %v2230 = vxor.u32 %v2221, 2147483648
    %v2231 = vsel %vm2229, %v2230, %v2222
    %v2232 = vsel %vm2225, %v2228, %v2231
    %v2233 = vsel %vm2223, nan, %v2232
    %v2234 = vand.u32 2147483647, %v688
    %vm2235 = vcmp.le.f32.partialorder %v2234, 0.7853982
    %vm2236 = vcmp.lt.s32.totalorder %v688, 0
    %v2237 = vand.u32 %v688, 2139095040
    %v2238 = vshrl.u32 %v2237, 23
    %v2239 = vsub.s32 %v2238, 127
    %v2240 = vand.u32 2147483647, %v688
    %v2241 = vand.u32 %v2240, 8388607
    %v2242 = vor.u32 %v2241, 8388608
    %v2243 = vsub.s32 0, %v2242
    %v2244 = vadd.s32 %v2239, 1
    %vm2245 = vcmp.gt.s32.totalorder %v2244, 0
    %v2246 = vsel %vm2245, %v2244, 0
    %v2247 = vshrl.u32 %v2246, 5
    %v2248 = vand.u32 %v2246, 31
    %v2249 = vsub.s32 32, %v2248
    %v2250 = vshrl.u32 683565275, %v2249
    %v2251 = vshll.u32 683565275, %v2248
    %v2252 = vshrl.u32 2475754826, %v2249
    %v2253 = vor.u32 %v2251, %v2252
    %v2254 = vshll.u32 2475754826, %v2248
    %v2255 = vshrl.u32 2131351028, %v2249
    %v2256 = vor.u32 %v2254, %v2255
    %v2257 = vshll.u32 2131351028, %v2248
    %v2258 = vshrl.u32 2102212464, %v2249
    %v2259 = vor.u32 %v2257, %v2258
    %v2260 = vshll.u32 2102212464, %v2248
    %v2261 = vshrl.u32 920167782, %v2249
    %v2262 = vor.u32 %v2260, %v2261
    %v2263 = vshll.u32 920167782, %v2248
    %v2264 = vshrl.u32 1326507024, %v2249
    %v2265 = vor.u32 %v2263, %v2264
    %vm2266 = vcmp.lt.s32.totalorder %v2247, 1
    %vm2267 = vcmp.lt.s32.totalorder %v2247, 2
    %vm2268 = vcmp.lt.s32.totalorder %v2247, 3
    %vm2269 = vcmp.lt.s32.totalorder %v2247, 4
    %v2270 = vsel %vm2266, %v2250, %v2253
    %v2271 = vsel %vm2269, %v2259, 2102212464
    %v2272 = vsel %vm2268, %v2256, %v2271
    %v2273 = vsel %vm2267, %v2270, %v2272
    %v2274 = vsel %vm2266, %v2253, %v2256
    %v2275 = vsel %vm2269, %v2262, 920167782
    %v2276 = vsel %vm2268, %v2259, %v2275
    %v2277 = vsel %vm2267, %v2274, %v2276
    %v2278 = vsel %vm2266, %v2256, %v2259
    %v2279 = vsel %vm2269, %v2265, 1326507024
    %v2280 = vsel %vm2268, %v2262, %v2279
    %v2281 = vsel %vm2267, %v2278, %v2280
    %v2282 = vshll.u32 %v2242, 8
    %v2283 = vmul.u32.u64.compose %v2282, %v2281
    %v2284 = vextract.low.u32 %v2283
    %v2285 = vextract.high.u32 %v2283
    %v2286 = vmul.u32.u64.compose %v2282, %v2277
    %v2287 = vextract.low.u32 %v2286
    %v2288 = vextract.high.u32 %v2286
    %v2289 = vmul.u32 %v2282, %v2273
    %v2290 = vadd.s32 %v2285, %v2287
    %vm2291 = vc.u32 %v2285, %v2287
    %v2292 = vadd.s32 %v2288, 1
    %v2293 = vsel %vm2291, %v2292, %v2288
    %v2294 = vadd.s32 %v2289, %v2293
    %v2295 = vadd.s32 %v2294, 536870912
    %v2296 = vshrl.u32 %v2295, 30
    %v2297 = vshll.u32 %v2296, 30
    %v2298 = vsub.s32 %v2294, %v2297
    %vm2299 = vcmp.lt.s32.totalorder %v2298, 0
    %v2300 = vsub.s32 0, %v2298
    %v2301 = vsel %vm2299, %v2300, %v2298
    %v2302 = vclz %v2301
    %v2303 = vsub.s32 %v2302, 2
    %vm2304 = vcmp.gt.s32.totalorder 0, %v2303
    %v2305 = vsel %vm2304, 0, %v2303
    %v2306 = vsub.s32 32, %v2305
    %v2307 = vshll.u32 %v2298, %v2305
    %v2308 = vshrl.u32 %v2290, %v2306
    %v2309 = vor.u32 %v2307, %v2308
    %v2310 = vsub.s32 4294967266, %v2305
    %v2311 = vadd.s32 %v2310, 127
    %v2312 = vshll.u32 %v2311, 23
    %v2313 = vor.u32 4788187, %v2312
    %v2314 = vand.u32 2147483647, %v2313
    %v2316 = vcvt.s32.f32 %v2309
    %v2317 = vmul.f32 %v2316, %v2314
    %v2318 = vxor.u32 %v2317, 2147483648
    %v2319 = vsel %vm2236, %v2318, %v2317
    %v2320 = vsub.s32 4, %v2296
    %v2321 = vsel %vm2236, %v2320, %v2296
    %v2322 = vsel %vm2235, %v688, %v2319
    %v2323 = vsel %vm2235, 0, %v2321
    %v2324 = vcosq.f32.pop %v2322
    %v2325 = vsinq.f32.pop %v2322
    %vm2326 = vweird.f32 %v688
    %v2327 = vand.u32 %v2323, 3
    %vm2328 = vcmp.lt.s32.totalorder %v2327, 2
    %vm2329 = vcmp.eq.s32.totalorder %v2327, 0
    %v2330 = vxor.u32 %v2325, 2147483648
    %v2331 = vsel %vm2329, %v2324, %v2330
    %vm2332 = vcmp.eq.s32.totalorder %v2327, 2
    %v2333 = vxor.u32 %v2324, 2147483648
    %v2334 = vsel %vm2332, %v2333, %v2325
    %v2335 = vsel %vm2328, %v2331, %v2334
    %v2336 = vsel %vm2326, nan, %v2335
    %v2337 = vmul.f32 %v567, %v791
    %v2338 = vmul.f32 %v574, %v894
    %v2339 = vmul.f32 %v581, %v997
    %v2340 = vmul.f32 %v588, %v1100
    %v2341 = vmul.f32 %v595, %v1203
    %v2342 = vmul.f32 %v602, %v1306
    %v2343 = vmul.f32 %v609, %v1409
    %v2344 = vmul.f32 %v616, %v1512
    %v2345 = vmul.f32 %v623, %v1615
    %v2346 = vmul.f32 %v630, %v1718
    %v2347 = vmul.f32 %v637, %v1821
    %v2348 = vmul.f32 %v644, %v1924
    %v2349 = vmul.f32 %v651, %v2027
    %v2350 = vmul.f32 %v658, %v2130
    %v2351 = vmul.f32 %v665, %v2233
    %v2352 = vmul.f32 %v672, %v2336
    %v2353 = vld [vmem:[#allocation4] sm:$0xff]
    %v2354 = vld [vmem:[#allocation4 + $0x8] sm:$0xff]
    %v2371 = vcombine.low %v2337, %v2338
    %v2372 = vcombine.low %v2339, %v2340
    %v2373 = vcombine.low %v2341, %v2342
    %v2374 = vcombine.low %v2343, %v2344
    %v2376 = vunpack.c.l.s4 1966171168
    %v2377 = vunpack.c.0.s8 %v2376
    %v2378 = vlaneseq
    %v2379 = vshrl.u32 %v2378, 7
    %v2380 = vsub.s32 %v2377, %v2379
    %v2381 = vrot.slane %v2371, %v2380
    %v2383 = vunpack.c.l.s4 1966171168
    %v2384 = vunpack.c.0.s8 %v2383
    %v2385 = vlaneseq
    %v2386 = vshrl.u32 %v2385, 7
    %v2387 = vsub.s32 %v2384, %v2386
    %v2388 = vrot.slane %v2372, %v2387
    %v2390 = vunpack.c.l.s4 1966171168
    %v2391 = vunpack.c.0.s8 %v2390
    %v2392 = vlaneseq
    %v2393 = vshrl.u32 %v2392, 7
    %v2394 = vsub.s32 %v2391, %v2393
    %v2395 = vrot.slane %v2373, %v2394
    %v2397 = vunpack.c.l.s4 1966171168
    %v2398 = vunpack.c.0.s8 %v2397
    %v2399 = vlaneseq
    %v2400 = vshrl.u32 %v2399, 7
    %v2401 = vsub.s32 %v2398, %v2400
    %v2402 = vrot.slane %v2374, %v2401
    %v2403 = vcombine.low %v2381, %v2388
    %v2404 = vcombine.low %v2395, %v2402
    %v2406 = vunpack.c.l.s4 1966171168
    %v2407 = vunpack.c.0.s8 %v2406
    %v2408 = vlaneseq
    %v2409 = vshrl.u32 %v2408, 7
    %v2410 = vsub.s32 %v2407, %v2409
    %v2411 = vrot.slane %v2403, %v2410
    %v2413 = vunpack.c.l.s4 1966171168
    %v2414 = vunpack.c.0.s8 %v2413
    %v2415 = vlaneseq
    %v2416 = vshrl.u32 %v2415, 7
    %v2417 = vsub.s32 %v2414, %v2416
    %v2418 = vrot.slane %v2404, %v2417
    %v2419 = vcombine.low %v2411, %v2418
    %v2420 = vcombine.low %v2345, %v2346
    %v2421 = vcombine.low %v2347, %v2348
    %v2422 = vcombine.low %v2349, %v2350
    %v2423 = vcombine.low %v2351, %v2352
    %v2425 = vunpack.c.l.s4 1966171168
    %v2426 = vunpack.c.0.s8 %v2425
    %v2427 = vlaneseq
    %v2428 = vshrl.u32 %v2427, 7
    %v2429 = vsub.s32 %v2426, %v2428
    %v2430 = vrot.slane %v2420, %v2429
    %v2432 = vunpack.c.l.s4 1966171168
    %v2433 = vunpack.c.0.s8 %v2432
    %v2434 = vlaneseq
    %v2435 = vshrl.u32 %v2434, 7
    %v2436 = vsub.s32 %v2433, %v2435
    %v2437 = vrot.slane %v2421, %v2436
    %v2439 = vunpack.c.l.s4 1966171168
    %v2440 = vunpack.c.0.s8 %v2439
    %v2441 = vlaneseq
    %v2442 = vshrl.u32 %v2441, 7
    %v2443 = vsub.s32 %v2440, %v2442
    %v2444 = vrot.slane %v2422, %v2443
    %v2446 = vunpack.c.l.s4 1966171168
    %v2447 = vunpack.c.0.s8 %v2446
    %v2448 = vlaneseq
    %v2449 = vshrl.u32 %v2448, 7
    %v2450 = vsub.s32 %v2447, %v2449
    %v2451 = vrot.slane %v2423, %v2450
    %v2452 = vcombine.low %v2430, %v2437
    %v2453 = vcombine.low %v2444, %v2451
    %v2455 = vunpack.c.l.s4 1966171168
    %v2456 = vunpack.c.0.s8 %v2455
    %v2457 = vlaneseq
    %v2458 = vshrl.u32 %v2457, 7
    %v2459 = vsub.s32 %v2456, %v2458
    %v2460 = vrot.slane %v2452, %v2459
    %v2462 = vunpack.c.l.s4 1966171168
    %v2463 = vunpack.c.0.s8 %v2462
    %v2464 = vlaneseq
    %v2465 = vshrl.u32 %v2464, 7
    %v2466 = vsub.s32 %v2463, %v2465
    %v2467 = vrot.slane %v2453, %v2466
    %v2468 = vcombine.low %v2460, %v2467
    %v2471 = vadd.f32 %v2353, %v2419
    %v2472 = vadd.f32 %v2354, %v2468
    %2473 = vst [vmem:[#allocation7] sm:$0xff] %v2471
    %2474 = vst [vmem:[#allocation7 + $0x8] sm:$0xff] %v2472
    // Predicated region
    $region10: #{tpu_custom_call.1} parent=1 // pred_check
      _
    $region11: #{tpu_custom_call.1} parent=1 // pred_check_branch
      %2476 = sbr.rel (0) target = $region13
    $region12: #{tpu_custom_call.1} parent=1 // pred_region
      %s2478 = ssub.s32 256, 256
      %2479 = vsyncadd [#allocation6], %s2478
      %s2481 = sshll.u32 [#allocation7], 4
      %s2482 = int_to_ptr.vmem [resolvable:$true] %s2481
      %2484 = dma.vmem_to_hbm [thread:$0]  %s2482, 256, %s2, [#allocation6]
    $region13: #{tpu_custom_call.1} parent=1 // pred_fallthru
      _
    // Predicated region
    $region14: #{tpu_custom_call.1} parent=1 // pred_check
      _
    $region15: #{tpu_custom_call.1} parent=1 // pred_check_branch
      %2486 = sbr.rel (0) target = $region17
    $region16: #{tpu_custom_call.1} parent=1 // pred_region
      %2487 = dma.done [#allocation6], 256
    $region17: #{tpu_custom_call.1} parent=1 // pred_fallthru
      _
    %2488 = vsyncpa [#allocation5], 1
    %2489 = vsyncpa [#allocation6], 1

</llo_original>
